<compile_context>
chip_gen: v7x
topology: tpu7x:2x2x1
jax: 0.10.0
libtpu: 0.0.40
codegen_flags: <defaults>
</compile_context>

<pallas_src>
import functools
import jax
import jax.numpy as jnp
from jax import lax
from jax.experimental import pallas as pl
from jax.experimental.pallas import tpu as pltpu

LEAKY_SLOPE = 0.1


# --------------------------------------------------------------------------
# Generation-aware VMEM budget
# --------------------------------------------------------------------------
def _tpu_vmem_capacity():
    try:
        info = pltpu.get_tpu_info()
        cap = int(getattr(info, "vmem_capacity_bytes", 0))
        if cap > 0:
            return cap
    except Exception:
        pass
    return 128 * 1024 * 1024


_VMEM_CAP = _tpu_vmem_capacity()
# ~32 MiB scoped on v7x (64 MiB physical / TC), 64 MiB on v5e/v6e (128 MiB).
_VMEM_LIMIT = int(min(_VMEM_CAP // 2, 64 * 1024 * 1024))
_TILE_BUDGET = (_VMEM_LIMIT * 3) // 4


# --------------------------------------------------------------------------
# Pallas kernels
# --------------------------------------------------------------------------
def _conv_mm_kernel(*refs, leaky, has_residual):
    """K-tiled conv-as-matmul with f32 accumulator.

    Epilogue (last K step): + bias, LeakyReLU, optional fused residual add,
    cast + store (bf16)."""
    if has_residual:
        p_ref, w_ref, b_ref, r_ref, o_ref, acc_ref = refs
    else:
        p_ref, w_ref, b_ref, o_ref, acc_ref = refs
        r_ref = None

    kk = pl.program_id(2)

    @pl.when(kk == 0)
    def _():
        acc_ref[...] = jnp.zeros_like(acc_ref)

    acc_ref[...] += jnp.dot(p_ref[...], w_ref[...],
                            preferred_element_type=jnp.float32)

    @pl.when(kk == pl.num_programs(2) - 1)
    def _():
        y = acc_ref[...] + b_ref[...]
        if leaky:
            y = jnp.maximum(y, LEAKY_SLOPE * y)
        if has_residual:
            y = y + r_ref[...].astype(jnp.float32)
        o_ref[...] = y.astype(o_ref.dtype)


def _decode_kernel(t_ref, o_ref, *, stride, H, W, anchors):
    """YOLO decode: sigmoid(xy)*stride + grid*stride, exp(wh)*anchor, sigmoid(rest).

    Grid offsets are generated with iota in-kernel; anchors are constants."""
    t = t_ref[...].astype(jnp.float32)                 # (B*A*H*W, D)
    col = lax.broadcasted_iota(jnp.int32, t.shape, 1)
    row = lax.broadcasted_iota(jnp.int32, t.shape, 0)
    gx = (row % W).astype(jnp.float32)
    gy = ((row // W) % H).astype(jnp.float32)
    aidx = (row // (W * H)) % len(anchors)

    sig = 1.0 / (1.0 + jnp.exp(-t))

    aw = jnp.zeros_like(t)
    ah = jnp.zeros_like(t)
    for a, (w_a, h_a) in enumerate(anchors):
        aw = jnp.where(aidx == a, w_a, aw)
        ah = jnp.where(aidx == a, h_a, ah)

    xy = sig * stride + jnp.where(col == 0, gx, gy) * stride
    # mask exp input so discarded columns never blow up to inf
    wh = jnp.exp(jnp.where((col == 2) | (col == 3), t, 0.0)) \
        * jnp.where(col == 2, aw, ah)
    o_ref[...] = jnp.where(col < 2, xy, jnp.where(col < 4, wh, sig))


# --------------------------------------------------------------------------
# Tiling helpers
# --------------------------------------------------------------------------
def _round_up(x, m):
    return ((x + m - 1) // m) * m


def _pick_tk(K):
    """Return (tk, Kp). Full K when small; else a lane-aligned divisor of Kp."""
    if K <= 1024:
        return K, K
    Kp = _round_up(K, 128)
    for tk in (512, 384, 256, 128):
        if Kp % tk == 0:
            return tk, Kp
    return 512, _round_up(K, 512)


def _pick_tn(Np):
    if Np <= 512:
        return Np
    for tn in (512, 384, 256, 128):
        if Np % tn == 0:
            return tn
    return 128


def _tile_vmem_bytes(tm, tn, tk, has_res):
    b = 2 * (tm * tk * 2)        # patches (bf16) double-buffered
    b += 2 * (tk * tn * 2)       # weights (bf16)
    b += 2 * (tn * 4)            # bias (f32)
    b += 2 * (tm * tn * 2)       # output (bf16)
    if has_res:
        b += 2 * (tm * tn * 2)   # residual (bf16)
    b += tm * tn * 4             # f32 accumulator scratch
    return b


# --------------------------------------------------------------------------
# Fused conv matmul (bias + LeakyReLU + optional residual)
# --------------------------------------------------------------------------
def _matmul_bias_act(patches, w, bias, residual, leaky):
    M, K = patches.shape
    _, N = w.shape
    has_res = residual is not None

    # tile selection
    tm = min(512, _round_up(M, 128))
    Np = max(128, _round_up(N, 128))       # lane-dense output columns
    tn = _pick_tn(Np)
    tk, Kp = _pick_tk(K)

    # shrink under the generation-aware VMEM budget
    while _tile_vmem_bytes(tm, tn, tk, has_res) > _TILE_BUDGET:
        if tk >= 256 and tk % 256 == 0 and Kp % (tk // 2) == 0:
            tk //= 2
        elif tn >= 256 and tn % 256 == 0 and Np % (tn // 2) == 0:
            tn //= 2
        elif tm > 128:
            tm //= 2
        else:
            break
    Mp = _round_up(M, tm)

    # zero padding (padded rows/cols contribute zeros and are sliced off)
    if Mp != M or Kp != K:
        patches = jnp.pad(patches, ((0, Mp - M), (0, Kp - K)))
    if Kp != K or Np != N:
        w = jnp.pad(w, ((0, Kp - K), (0, Np - N)))
    if Np != N:
        bias = jnp.pad(bias, ((0, 0), (0, Np - N)))
    if has_res and (Mp != M or Np != N):
        residual = jnp.pad(residual, ((0, Mp - M), (0, Np - N)))

    grid = (Mp // tm, Np // tn, Kp // tk)

    in_specs = [
        pl.BlockSpec((tm, tk), lambda i, j, k: (i, k)),
        pl.BlockSpec((tk, tn), lambda i, j, k: (k, j)),
        pl.BlockSpec((1, tn), lambda i, j, k: (0, j)),
    ]
    inputs = [patches, w, bias]
    if has_res:
        in_specs.append(pl.BlockSpec((tm, tn), lambda i, j, k: (i, j)))
        inputs.append(residual)

    out = pl.pallas_call(
        functools.partial(_conv_mm_kernel, leaky=leaky, has_residual=has_res),
        out_shape=jax.ShapeDtypeStruct((Mp, Np), jnp.bfloat16),
        grid_spec=pltpu.PrefetchScalarGridSpec(
            num_scalar_prefetch=0,
            grid=grid,
            in_specs=in_specs,
            out_specs=pl.BlockSpec((tm, tn), lambda i, j, k: (i, j)),
            scratch_shapes=[pltpu.VMEM((tm, tn), jnp.float32)],
        ),
        compiler_params=pltpu.CompilerParams(
            dimension_semantics=("parallel", "parallel", "arbitrary"),
            vmem_limit_bytes=_VMEM_LIMIT,
        ),
    )(*inputs)
    return out[:M, :N]


# --------------------------------------------------------------------------
# Conv / im2col glue
# --------------------------------------------------------------------------
def _im2col(x, k, stride):
    # x: (B, H, W, C) bf16, SAME-style padding = k // 2 (Darknet convention)
    B, H, W, C = x.shape
    pad = k // 2
    if pad:
        x = jnp.pad(x, ((0, 0), (pad, pad), (pad, pad), (0, 0)))
    Ho = (H + 2 * pad - k) // stride + 1
    Wo = (W + 2 * pad - k) // stride + 1
    cols = []
    for dh in range(k):
        for dw in range(k):
            cols.append(
                x[:, dh:dh + stride * (Ho - 1) + 1:stride,
                  dw:dw + stride * (Wo - 1) + 1:stride, :]
            )
    p = cols[0] if len(cols) == 1 else jnp.concatenate(cols, axis=-1)
    return p.reshape(B * Ho * Wo, k * k * C), Ho, Wo


@functools.partial(jax.jit, static_argnames=("k", "stride", "leaky"))
def _conv_call(x, w, bias, residual, k, stride, leaky):
    patches, Ho, Wo = _im2col(x, k, stride)
    r2 = None
    if residual is not None:
        r2 = residual.reshape(-1, residual.shape[-1])
    out = _matmul_bias_act(patches, w, bias, r2, leaky)
    return out.reshape(x.shape[0], Ho, Wo, -1)


def conv_block(x, p, leaky=True, residual=None):
    """ConvBlock: Conv(k, stride, pad=k//2) + folded BN (in weights/bias)
    + LeakyReLU; the residual add of a Darknet bottleneck is fused in."""
    return _conv_call(x, p["w"], p["bias"], residual,
                      k=p["k"], stride=p["stride"], leaky=leaky)


def upsample2x(x):
    # nearest-neighbour upsample, NHWC
    x = jnp.repeat(x, 2, axis=1)
    return jnp.repeat(x, 2, axis=2)


# --------------------------------------------------------------------------
# YOLO decode
# --------------------------------------------------------------------------
@functools.partial(jax.jit, static_argnames=("anchors", "stride"))
def _decode_call(raw, anchors, stride):
    B, H, W, AD = raw.shape
    A = len(anchors)
    D = AD // A
    # (B,H,W,A*D) -> (B,A,H,W,D) -> (B*A*H*W, D)  (matches PyTorch view/permute)
    t = raw.reshape(B, H, W, A, D).transpose(0, 3, 1, 2, 4).reshape(B * A * H * W, D)
    out = pl.pallas_call(
        functools.partial(_decode_kernel, stride=stride, H=H, W=W, anchors=anchors),
        out_shape=jax.ShapeDtypeStruct((B * A * H * W, D), jnp.float32),
    )(t)
    return out.reshape(B, A * H * W, D)


def yolo_decode(raw, anchors, num_classes, img_size):
    H = raw.shape[1]
    stride = float(img_size) / float(H)
    anchors_t = tuple((float(a), float(b)) for a, b in anchors)
    return _decode_call(raw, anchors=anchors_t, stride=stride)


# --------------------------------------------------------------------------
# Deterministic parameter construction (BN folded into bf16 weights)
# --------------------------------------------------------------------------
class ParamGen:
    def __init__(self, key):
        self.key = key
        self.count = 0

    def _next(self):
        self.count += 1
        return jax.random.fold_in(self.key, self.count)

    def conv_bn(self, cin, cout, k, stride=1):
        fan_in = k * k * cin
        w = jax.random.normal(self._next(), (k, k, cin, cout), jnp.float32)
        w = w * (0.5 * fan_in ** -0.5)
        k1, k2, k3, k4 = jax.random.split(self._next(), 4)
        gamma = 1.0 + 0.1 * jax.random.normal(k1, (cout,), jnp.float32)
        beta = 0.1 * jax.random.normal(k2, (cout,), jnp.float32)
        mean = 0.1 * jax.random.normal(k3, (cout,), jnp.float32)
        var = 1.0 + 0.1 * jax.random.uniform(k4, (cout,), jnp.float32)
        scale = gamma / jnp.sqrt(var + 1e-5)
        bias = beta - mean * scale
        # fold BN scale into the weights in f32, THEN cast to bf16 for the MXU
        w_f = (w * scale[None, None, None, :]).reshape(fan_in, cout)
        return dict(w=w_f.astype(jnp.bfloat16),
                    bias=bias.reshape(1, cout).astype(jnp.float32),
                    k=k, stride=stride)

    def conv_bias(self, cin, cout, k, stride=1):
        fan_in = k * k * cin
        w = jax.random.normal(self._next(), (k, k, cin, cout), jnp.float32)
        w = w * (0.5 * fan_in ** -0.5)
        b = 0.1 * jax.random.normal(self._next(), (cout,), jnp.float32)
        return dict(w=w.reshape(fan_in, cout).astype(jnp.bfloat16),
                    bias=b.reshape(1, cout).astype(jnp.float32),
                    k=k, stride=stride)


def build_darknet53(pg, in_ch):
    params = {"stem": pg.conv_bn(in_ch, 32, 3, 1), "stages": []}
    ch = 32
    for out_ch, nres in [(64, 1), (128, 2), (256, 8), (512, 8), (1024, 4)]:
        stage = {"down": pg.conv_bn(ch, out_ch, 3, 2), "res": []}
        for _ in range(nres):
            stage["res"].append((pg.conv_bn(out_ch, out_ch // 2, 1),
                                 pg.conv_bn(out_ch // 2, out_ch, 3)))
        params["stages"].append(stage)
        ch = out_ch
    return params


def build_yolo_block(pg, cin, cmid, cbig, num_anchors, num_classes):
    return dict(c1=pg.conv_bn(cin, cmid, 1),
                c2=pg.conv_bn(cmid, cbig, 3),
                head=pg.conv_bias(cbig, num_anchors * (5 + num_classes), 1))


def build_yolov3_params(key, in_ch, num_classes):
    pg = ParamGen(key)
    P = {}
    P["darknet"] = build_darknet53(pg, in_ch)
    P["b75"] = [pg.conv_bn(1024, 512, 1), pg.conv_bn(512, 1024, 3),
                pg.conv_bn(1024, 512, 1), pg.conv_bn(512, 1024, 3)]
    P["yolo1"] = build_yolo_block(pg, 1024, 512, 1024, 3, num_classes)
    P["up1"] = pg.conv_bn(512, 256, 1)
    P["b87"] = [pg.conv_bn(768, 256, 1), pg.conv_bn(256, 512, 3),
                pg.conv_bn(512, 256, 1), pg.conv_bn(256, 512, 3)]
    P["yolo2"] = build_yolo_block(pg, 512, 256, 512, 3, num_classes)
    P["up2"] = pg.conv_bn(256, 128, 1)
    P["b99"] = [pg.conv_bn(384, 128, 1), pg.conv_bn(128, 256, 3),
                pg.conv_bn(256, 128, 1), pg.conv_bn(128, 256, 3)]
    P["yolo3"] = build_yolo_block(pg, 256, 128, 256, 3, num_classes)
    return P


# --------------------------------------------------------------------------
# Forward pass
# --------------------------------------------------------------------------
def darknet53_forward(x, p):
    x = conv_block(x, p["stem"])
    feats = []
    for stage in p["stages"]:
        x = conv_block(x, stage["down"])
        for c1, c2 in stage["res"]:
            h = conv_block(x, c1)
            x = conv_block(h, c2, residual=x)   # residual add fused in kernel
        feats.append(x)
    return feats[2], feats[3], feats[4]   # out_36 (256ch), out_61 (512ch), out_74 (1024ch)


def yolo_block_forward(x, p, anchors, num_classes, img_size):
    branch = conv_block(x, p["c1"])
    h = conv_block(branch, p["c2"])
    raw = conv_block(h, p["head"], leaky=False)   # detection conv: linear + bias
    return branch, yolo_decode(raw, anchors, num_classes, img_size)


def yolov3_forward(x_nchw, P, anchors, num_classes, img_size):
    x = jnp.transpose(x_nchw, (0, 2, 3, 1)).astype(jnp.bfloat16)   # NCHW -> NHWC bf16
    out_36, out_61, out_74 = darknet53_forward(x, P["darknet"])

    h = out_74
    for p in P["b75"]:
        h = conv_block(h, p)
    out_79, y1 = yolo_block_forward(h, P["yolo1"], anchors[6:], num_classes, img_size)

    u = upsample2x(conv_block(out_79, P["up1"]))
    h = jnp.concatenate([u, out_61], axis=-1)     # channel concat (dim 1 in NCHW)
    for p in P["b87"]:
        h = conv_block(h, p)
    out_91, y2 = yolo_block_forward(h, P["yolo2"], anchors[3:6], num_classes, img_size)

    u = upsample2x(conv_block(out_91, P["up2"]))
    h = jnp.concatenate([u, out_36], axis=-1)
    for p in P["b99"]:
        h = conv_block(h, p)
    _, y3 = yolo_block_forward(h, P["yolo3"], anchors[:3], num_classes, img_size)

    return jnp.concatenate([y1, y2, y3], axis=1)


# --------------------------------------------------------------------------
if __name__ == "__main__":
    key = jax.random.PRNGKey(0)
    anchors = [(10, 13), (16, 30), (33, 23),
               (30, 61), (62, 45), (59, 119),
               (116, 90), (156, 198), (373, 326)]
    classes = {0: "cat", 1: "dog"}
    num_classes = len(classes)
    img_size = 64           # small image; strides 32/16/8 -> grids 2/4/8
    in_ch = 3
    batch = 2

    kp, kx = jax.random.split(key)
    params = build_yolov3_params(kp, in_ch, num_classes)
    x = jax.random.normal(kx, (batch, in_ch, img_size, img_size), jnp.float32)

    out = yolov3_forward(x, params, anchors, num_classes, img_size)
    out = jax.block_until_ready(out)

    expected_preds = 3 * (2 * 2 + 4 * 4 + 8 * 8)   # 3 anchors per scale
    assert out.shape == (batch, expected_preds, 5 + num_classes), out.shape
    assert bool(jnp.all(jnp.isfinite(out)))
    print("KERNEL_OK")
</pallas_src>

<mosaic_0001>
module attributes {stable_mosaic.version = 11 : i64} {
  func.func @_conv_mm_kernel(%arg0: i32, %arg1: i32, %arg2: i32, %arg3: memref<512x27xbf16, #tpu.memory_space<vmem>>, %arg4: memref<27x128xbf16, #tpu.memory_space<vmem>>, %arg5: memref<1x128xf32, #tpu.memory_space<vmem>>, %arg6: memref<512x128xbf16, #tpu.memory_space<vmem>>, %arg7: memref<512x128xf32, #tpu.memory_space<vmem>>) attributes {dimension_semantics = [#tpu.dimension_semantics<parallel>, #tpu.dimension_semantics<parallel>, #tpu.dimension_semantics<arbitrary>], iteration_bounds = array<i64: 16, 1, 1>, scalar_prefetch = 0 : i64, scratch_operands = 1 : i64, tpu.core_type = #tpu.core_type<tc>, window_params = [{transform_indices = @transform_0, window_bounds = array<i64: 512, 27>}, {transform_indices = @transform_1, window_bounds = array<i64: 27, 128>}, {transform_indices = @transform_2, window_bounds = array<i64: 1, 128>}, {transform_indices = @transform_3, window_bounds = array<i64: 512, 128>}]} {
    %c0_i32 = arith.constant 0 : i32
    %0 = arith.cmpi eq, %arg2, %c0_i32 : i32
    %1 = arith.extui %0 : i1 to i32
    %c0_i32_0 = arith.constant 0 : i32
    %2 = arith.cmpi ne, %1, %c0_i32_0 : i32
    scf.if %2 {
      %cst_10 = arith.constant 0.000000e+00 : f32
      %12 = vector.broadcast %cst_10 : f32 to vector<512x128xf32>
      %c0_11 = arith.constant 0 : index
      %c0_12 = arith.constant 0 : index
      %13 = vector.load %arg7[%c0_11, %c0_12] : memref<512x128xf32, #tpu.memory_space<vmem>>, vector<512x128xf32>
      tpu.vector_store %arg7[%c0_11, %c0_12], %12 {strides = array<i32>} : memref<512x128xf32, #tpu.memory_space<vmem>>, vector<512x128xf32>,
    } else {
    }
    %c0 = arith.constant 0 : index
    %c0_1 = arith.constant 0 : index
    %3 = vector.load %arg7[%c0, %c0_1] : memref<512x128xf32, #tpu.memory_space<vmem>>, vector<512x128xf32>
    %c0_2 = arith.constant 0 : index
    %c0_3 = arith.constant 0 : index
    %4 = vector.load %arg3[%c0_2, %c0_3] : memref<512x27xbf16, #tpu.memory_space<vmem>>, vector<512x27xbf16>
    %c0_4 = arith.constant 0 : index
    %c0_5 = arith.constant 0 : index
    %5 = vector.load %arg4[%c0_4, %c0_5] : memref<27x128xbf16, #tpu.memory_space<vmem>>, vector<27x128xbf16>
    %cst = arith.constant dense<0.000000e+00> : vector<512x128xf32>
    %6 = tpu.matmul %4, %5, %cst {dimension_numbers = #tpu.dot_dimension_numbers<[1], [0], [0], [1], [0, 0, 1, 1], [], []>} : vector<512x27xbf16>, vector<27x128xbf16>, vector<512x128xf32> -> vector<512x128xf32>
    %7 = arith.addf %3, %6 : vector<512x128xf32>
    %c0_6 = arith.constant 0 : index
    %c0_7 = arith.constant 0 : index
    %8 = vector.load %arg7[%c0_6, %c0_7] : memref<512x128xf32, #tpu.memory_space<vmem>>, vector<512x128xf32>
    tpu.vector_store %arg7[%c0_6, %c0_7], %7 {strides = array<i32>} : memref<512x128xf32, #tpu.memory_space<vmem>>, vector<512x128xf32>,
    %c0_i32_8 = arith.constant 0 : i32
    %9 = arith.cmpi eq, %arg2, %c0_i32_8 : i32
    %10 = arith.extui %9 : i1 to i32
    %c0_i32_9 = arith.constant 0 : i32
    %11 = arith.cmpi ne, %10, %c0_i32_9 : i32
    scf.if %11 {
      %c0_10 = arith.constant 0 : index
      %c0_11 = arith.constant 0 : index
      %12 = vector.load %arg7[%c0_10, %c0_11] : memref<512x128xf32, #tpu.memory_space<vmem>>, vector<512x128xf32>
      %c0_12 = arith.constant 0 : index
      %c0_13 = arith.constant 0 : index
      %13 = vector.load %arg5[%c0_12, %c0_13] : memref<1x128xf32, #tpu.memory_space<vmem>>, vector<1x128xf32>
      %14 = vector.broadcast %13 : vector<1x128xf32> to vector<512x128xf32>
      %15 = arith.addf %12, %14 : vector<512x128xf32>
      %cst_14 = arith.constant 1.000000e-01 : f32
      %16 = vector.broadcast %cst_14 : f32 to vector<512x128xf32>
      %17 = arith.mulf %16, %15 : vector<512x128xf32>
      %18 = arith.maximumf %15, %17 : vector<512x128xf32>
      %19 = arith.truncf %18 : vector<512x128xf32> to vector<512x128xbf16>
      %c0_15 = arith.constant 0 : index
      %c0_16 = arith.constant 0 : index
      %20 = vector.load %arg6[%c0_15, %c0_16] : memref<512x128xbf16, #tpu.memory_space<vmem>>, vector<512x128xbf16>
      tpu.vector_store %arg6[%c0_15, %c0_16], %19 {strides = array<i32>} : memref<512x128xbf16, #tpu.memory_space<vmem>>, vector<512x128xbf16>,
    } else {
    }
    return
  }
  func.func @transform_0(%arg0: i32, %arg1: i32, %arg2: i32) -> (i32, i32) {
    %c0_i32 = arith.constant 0 : i32
    return %arg0, %arg2 : i32, i32
  }
  func.func @transform_1(%arg0: i32, %arg1: i32, %arg2: i32) -> (i32, i32) {
    %c0_i32 = arith.constant 0 : i32
    return %arg2, %arg1 : i32, i32
  }
  func.func @transform_2(%arg0: i32, %arg1: i32, %arg2: i32) -> (i32, i32) {
    %c0_i32 = arith.constant 0 : i32
    %c0_i32_0 = arith.constant 0 : i32
    return %c0_i32, %arg1 : i32, i32
  }
  func.func @transform_3(%arg0: i32, %arg1: i32, %arg2: i32) -> (i32, i32) {
    %c0_i32 = arith.constant 0 : i32
    return %arg0, %arg1 : i32, i32
  }
}

</mosaic_0001>

<llo_original>
// kernel: _conv_call.1
$region0: #{_conv_call.1}
  #allocation0 [shape = 'u32[]', space=smem, size = 0x4, offset = 0x4, fixed_abs, tag = 'smem constant byte address 0x4 - core index']
  #allocation1 [shape = 'u32[144,128]{1,0:T(1,128)}', space=vmem, size = 0x12000, scoped, tag = 'internal scratch']
  #allocation2 [shape = 'f32[512,128]{1,0:T(8,128)}', space=vmem, size = 0x40000, scoped, tag = 'scratch operand']
  %s0 = inlined_call_operand.hbm [shape: bf16[8192,27], index: 0, kind: input, shape index: {}]
  %s1 = inlined_call_operand.hbm [shape: bf16[27,128], index: 1, kind: input, shape index: {}]
  %s2 = inlined_call_operand.hbm [shape: f32[1,128], index: 2, kind: input, shape index: {}]
  %s3 = inlined_call_operand.hbm [shape: bf16[8192,128], index: 3, kind: output, shape index: {}]
  %s4 = sld [smem:[#allocation0]]
  $region65: #{_conv_call.1} parent=0
    _
  %s6 = ssub.s32 1, %s4
  %s7 = scalar_select 0, %s6, %s4
  $region1: #{_conv_call.1} parent=0
    #allocation3 [shape = 'u8[262144]{0}', space=vmem, size = 0x40000, scoped, tag = 'input window, operand 0']
    #allocation4 [shape = 's32[2]{0}', space=sflag, size = 0x8, scoped, tag = 'scoped memory for _conv_call.1']
    #allocation5 [shape = 's32[2]{0}', space=sflag, size = 0x8, scoped, tag = 'scoped memory for _conv_call.1']
    #allocation6 [shape = 'u8[8192]{0}', space=vmem, size = 0x2000, scoped, tag = 'input window, operand 1, single buffered']
    #allocation7 [shape = 's32[1]{0}', space=sflag, size = 0x4, scoped, tag = 'scoped memory for _conv_call.1']
    #allocation8 [shape = 'u8[512]{0}', space=vmem, size = 0x400, scoped, tag = 'input window, operand 2, single buffered']
    #allocation9 [shape = 'u8[262144]{0}', space=vmem, size = 0x40000, scoped, tag = 'output window, operand 0']
    %8 = vsyncpa [#allocation4], 0
    %s9 = scalar_lea.sflag [#allocation4], 1
    %10 = vsyncpa %s9, 0
    %11 = vsyncpa [#allocation7], 0
    %12 = vsyncpa [#allocation5], 0
    %s13 = scalar_lea.sflag [#allocation5], 1
    %14 = vsyncpa %s13, 0
    loop: start=0, step=1, limit=18
    $region2: #{_conv_call.1} parent=1 // loop_pre_header
      _
    $region3: #{_conv_call.1} parent=1 // loop_header
      %s16 = sphi 0, %s20
      %p17 = scmp.ge.s32.totalorder %s16, 18
      %s23 = sphi 0, %s42
      %s24 = sphi 0, %s38
      %s25 = sphi 0, %s34
      %s26 = sphi 0, %s23
      %s27 = sphi 0, %s24
      %s28 = sphi 0, %s25
      %s29 = sphi 0, %s26
      %s30 = sphi 0, %s27
      %s31 = sphi 0, %s28
      %s47 = sphi 0, %s49
      %s50 = sphi 0, %s47
      %s51 = sphi 0, %s50
      %s67 = sphi 0, %s51
      %s75 = sphi 0, %s77
      %s78 = sphi 0, %s75
      %s79 = sphi 0, %s78
      %s95 = sphi 0, %s79
      %s101 = sphi 0, %s103
      %s104 = sphi 0, %s101
      %s105 = sphi 0, %s104
      %s121 = sphi 0, %s105
      %s129 = sphi 0, %s131
      %s132 = sphi 0, %s129
      %s133 = sphi 0, %s132
      %s149 = sphi 0, %s133
    $region4: #{_conv_call.1} parent=1 // loop_header_branch
      %19 = sbr.rel (%p17) target = $region8
    $region5: #{_conv_call.1} parent=1 // loop_body
      %s21 = ssub.s32 %s16, 1
      %s22 = ssub.s32 %s16, 2
      %s32 = sadd.s32 1, %s25
      %p33 = scmp.ge.s32.totalorder %s32, 1
      %s34 = scalar_select %p33, 0, %s32
      %s35 = sadd.s32 1, %s24
      %s36 = scalar_select %p33, %s35, %s24
      %p37 = scmp.ge.s32.totalorder %s36, 1
      %s38 = scalar_select %p37, 0, %s36
      %s39 = sadd.s32 1, %s23
      %s40 = scalar_select %p37, %s39, %s23
      %p41 = scmp.ge.s32.totalorder %s40, 16
      %s42 = scalar_select %p41, 0, %s40
      %s43 = ssub.s32 %s23, %s42
      %s44 = ssub.s32 %s25, %s34
      %s45 = sor.u32 %s43, %s44
      %p46 = scmp.eq.s32.totalorder %s45, 0
      %s48 = sadd.s32 %s47, 1
      %s49 = scalar_select %p46, %s47, %s48
      %p52 = pneg %p46
      %p53 = scmp.eq.s32.totalorder %s16, 15
      %p54 = por %p52, %p53
      %p55 = scmp.ne.s32.totalorder %s47, %s50
      %p56 = scmp.eq.s32.totalorder %s16, 0
      %p57 = por %p55, %p56
      %p58 = scmp.ne.s32.totalorder %s47, %s50
      %p59 = scmp.eq.s32.totalorder %s21, 15
      %p60 = por %p58, %p59
      %p61 = scmp.ne.s32.totalorder %s50, %s51
      %p62 = scmp.eq.s32.totalorder %s21, 0
      %p63 = por %p61, %p62
      %p64 = scmp.ne.s32.totalorder %s50, %s51
      %p65 = scmp.eq.s32.totalorder %s22, 15
      %p66 = por %p64, %p65
      %p68 = scmp.ne.s32.totalorder %s51, %s67
      %p69 = scmp.eq.s32.totalorder %s22, 0
      %p70 = por %p68, %p69
      %s71 = ssub.s32 %s25, %s34
      %s72 = ssub.s32 %s24, %s38
      %s73 = sor.u32 %s71, %s72
      %p74 = scmp.eq.s32.totalorder %s73, 0
      %s76 = sadd.s32 %s75, 1
      %s77 = scalar_select %p74, %s75, %s76
      %p80 = pneg %p74
      %p81 = scmp.eq.s32.totalorder %s16, 15
      %p82 = por %p80, %p81
      %p83 = scmp.ne.s32.totalorder %s75, %s78
      %p84 = scmp.eq.s32.totalorder %s16, 0
      %p85 = por %p83, %p84
      %p86 = scmp.ne.s32.totalorder %s75, %s78
      %p87 = scmp.eq.s32.totalorder %s21, 15
      %p88 = por %p86, %p87
      %p89 = scmp.ne.s32.totalorder %s78, %s79
      %p90 = scmp.eq.s32.totalorder %s21, 0
      %p91 = por %p89, %p90
      %p92 = scmp.ne.s32.totalorder %s78, %s79
      %p93 = scmp.eq.s32.totalorder %s22, 15
      %p94 = por %p92, %p93
      %p96 = scmp.ne.s32.totalorder %s79, %s95
      %p97 = scmp.eq.s32.totalorder %s22, 0
      %p98 = por %p96, %p97
      %s99 = ssub.s32 %s24, %s38
      %p100 = scmp.eq.s32.totalorder %s99, 0
      %s102 = sadd.s32 %s101, 1
      %s103 = scalar_select %p100, %s101, %s102
      %p106 = pneg %p100
      %p107 = scmp.eq.s32.totalorder %s16, 15
      %p108 = por %p106, %p107
      %p109 = scmp.ne.s32.totalorder %s101, %s104
      %p110 = scmp.eq.s32.totalorder %s16, 0
      %p111 = por %p109, %p110
      %p112 = scmp.ne.s32.totalorder %s101, %s104
      %p113 = scmp.eq.s32.totalorder %s21, 15
      %p114 = por %p112, %p113
      %p115 = scmp.ne.s32.totalorder %s104, %s105
      %p116 = scmp.eq.s32.totalorder %s21, 0
      %p117 = por %p115, %p116
      %p118 = scmp.ne.s32.totalorder %s104, %s105
      %p119 = scmp.eq.s32.totalorder %s22, 15
      %p120 = por %p118, %p119
      %p122 = scmp.ne.s32.totalorder %s105, %s121
      %p123 = scmp.eq.s32.totalorder %s22, 0
      %p124 = por %p122, %p123
      %s125 = ssub.s32 %s23, %s42
      %s126 = ssub.s32 %s24, %s38
      %s127 = sor.u32 %s125, %s126
      %p128 = scmp.eq.s32.totalorder %s127, 0
      %s130 = sadd.s32 %s129, 1
      %s131 = scalar_select %p128, %s129, %s130
      %p134 = pneg %p128
      %p135 = scmp.eq.s32.totalorder %s16, 15
      %p136 = por %p134, %p135
      %p137 = scmp.ne.s32.totalorder %s129, %s132
      %p138 = scmp.eq.s32.totalorder %s16, 0
      %p139 = por %p137, %p138
      %p140 = scmp.ne.s32.totalorder %s129, %s132
      %p141 = scmp.eq.s32.totalorder %s21, 15
      %p142 = por %p140, %p141
      %p143 = scmp.ne.s32.totalorder %s132, %s133
      %p144 = scmp.eq.s32.totalorder %s21, 0
      %p145 = por %p143, %p144
      %p146 = scmp.ne.s32.totalorder %s132, %s133
      %p147 = scmp.eq.s32.totalorder %s22, 15
      %p148 = por %p146, %p147
      %p150 = scmp.ne.s32.totalorder %s133, %s149
      %p151 = scmp.eq.s32.totalorder %s22, 0
      %p152 = por %p150, %p151
      %p153 = scmp.le.s32.totalorder 1, %s16
      %p154 = scmp.lt.s32.totalorder %s16, 17
      %p155 = pnand %p153, %p154
      %p156 = pneg %p155
      // Predicated region
      $region9: #{_conv_call.1} parent=5 // pred_check
        _
      $region10: #{_conv_call.1} parent=5 // pred_check_branch
        %158 = sbr.rel (%p155) target = $region12
      $region11: #{_conv_call.1} parent=5 // pred_region
        %s159 = ssub.s32 %s16, 1
        // Predicated region
        $region13: #{_conv_call.1} parent=11 // pred_check
          %p160 = pneg %p91
        $region14: #{_conv_call.1} parent=11 // pred_check_branch
          %162 = sbr.rel (%p160) target = $region16
        $region15: #{_conv_call.1} parent=11 // pred_region
          %s163 = smul.u32 4, %s28
          %s165 = ssub.s32 256, 256
          %166 = vsyncadd [#allocation7], %s165
          %s167 = sadd.s32 %s27, %s163
          %s168 = smul.addr %s167, 64
          %s169 = scalar_lea.hbm %s1, %s168
          %s170 = sshll.u32 [#allocation6], 4
          %s171 = int_to_ptr.vmem [resolvable:$true] %s170
          %176 = dma.hbm_to_vmem [thread:$0]  %s169, 256, %s171, [#allocation7], 64, 64, 4
        $region16: #{_conv_call.1} parent=11 // pred_fallthru
          _
        // Predicated region
        $region17: #{_conv_call.1} parent=11 // pred_check
          %p177 = pneg %p117
        $region18: #{_conv_call.1} parent=11 // pred_check_branch
          %179 = sbr.rel (%p177) target = $region20
        $region19: #{_conv_call.1} parent=11 // pred_region
          %s181 = ssub.s32 16, 16
          %182 = vsyncadd [#allocation7], %s181
          %s183 = smul.addr %s27, 16
          %s184 = scalar_lea.hbm %s2, %s183
          %s186 = sshll.u32 [#allocation8], 4
          %s187 = int_to_ptr.vmem [resolvable:$true] %s186
          %189 = dma.hbm_to_vmem [thread:$0]  %s184, 16, %s187, [#allocation7]
        $region20: #{_conv_call.1} parent=11 // pred_fallthru
          _
      $region12: #{_conv_call.1} parent=5 // pred_fallthru
        _
      %p190 = scmp.lt.s32.totalorder %s16, 16
      // Predicated region
      $region21: #{_conv_call.1} parent=5 // pred_check
        %p191 = pneg %p190
      $region22: #{_conv_call.1} parent=5 // pred_check_branch
        %193 = sbr.rel (%p191) target = $region24
      $region23: #{_conv_call.1} parent=5 // pred_region
        // Predicated region
        $region25: #{_conv_call.1} parent=23 // pred_check
          %p194 = pneg %p57
        $region26: #{_conv_call.1} parent=23 // pred_check_branch
          %196 = sbr.rel (%p194) target = $region28
        $region27: #{_conv_call.1} parent=23 // pred_region
          %s197 = sand.u32 %s47, 1
          %s198 = scalar_lea.sflag [#allocation4], %s197
          %s199 = sand.u32 %s47, 1
          %s200 = smul.addr %s199, 256
          %s201 = scalar_lea.vmem [#allocation3], %s200
          %s202 = smul.u32 64, %s23
          %s204 = ssub.s32 4096, 4096
          %205 = vsyncadd %s198, %s204
          %s206 = sadd.s32 %s25, %s202
          %s207 = smul.addr %s206, 64
          %s208 = scalar_lea.hbm %s0, %s207
          %s209 = sshll.u32 %s201, 4
          %s210 = int_to_ptr.vmem [resolvable:$true] %s209
          %215 = dma.hbm_to_vmem [thread:$0]  %s208, 4096, %s210, %s198, 64, 64, 4
        $region28: #{_conv_call.1} parent=23 // pred_fallthru
          _
      $region24: #{_conv_call.1} parent=5 // pred_fallthru
        _
      %p216 = scmp.le.s32.totalorder 1, %s16
      %p217 = scmp.lt.s32.totalorder %s16, 17
      %p218 = pnand %p216, %p217
      %p219 = pneg %p218
      // Predicated region
      $region29: #{_conv_call.1} parent=5 // pred_check
        _
      $region30: #{_conv_call.1} parent=5 // pred_check_branch
        %221 = sbr.rel (%p218) target = $region32
      $region31: #{_conv_call.1} parent=5 // pred_region
        %s222 = ssub.s32 %s16, 1
        %s223 = sand.u32 %s50, 1
        %s224 = scalar_lea.sflag [#allocation4], %s223
        %s225 = sand.u32 %s50, 1
        %s226 = smul.addr %s225, 256
        %s227 = scalar_lea.vmem [#allocation3], %s226
        // Predicated region
        $region33: #{_conv_call.1} parent=31 // pred_check
          %p228 = pneg %p63
        $region34: #{_conv_call.1} parent=31 // pred_check_branch
          %230 = sbr.rel (%p228) target = $region36
        $region35: #{_conv_call.1} parent=31 // pred_region
          %231 = dma.done %s224, 4096
        $region36: #{_conv_call.1} parent=31 // pred_fallthru
          _
        // Predicated region
        $region37: #{_conv_call.1} parent=31 // pred_check
          %p232 = pneg %p91
        $region38: #{_conv_call.1} parent=31 // pred_check_branch
          %234 = sbr.rel (%p232) target = $region40
        $region39: #{_conv_call.1} parent=31 // pred_region
          %235 = dma.done [#allocation7], 256
        $region40: #{_conv_call.1} parent=31 // pred_fallthru
          _
        // Predicated region
        $region41: #{_conv_call.1} parent=31 // pred_check
          %p236 = pneg %p117
        $region42: #{_conv_call.1} parent=31 // pred_check_branch
          %238 = sbr.rel (%p236) target = $region44
        $region43: #{_conv_call.1} parent=31 // pred_region
          %239 = dma.done [#allocation7], 16
        $region44: #{_conv_call.1} parent=31 // pred_fallthru
          _
        %s240 = sand.u32 %s50, 1
        %s241 = scalar_lea.sflag [#allocation4], %s240
        %s242 = sand.u32 %s50, 1
        %s243 = smul.addr %s242, 256
        %s244 = scalar_lea.vmem [#allocation3], %s243
        %p245 = pneg %p63
        %p246 = pneg %p60
        %p247 = pneg %p91
        %p248 = pneg %p88
        %p249 = pneg %p117
        %p250 = pneg %p114
        %p251 = pneg %p145
        %p252 = pneg %p142
        %s253 = sand.u32 %s132, 1
        %s254 = scalar_lea.sflag [#allocation5], %s253
        %s255 = sand.u32 %s132, 1
        %s256 = smul.addr %s255, 256
        %s257 = scalar_lea.vmem [#allocation9], %s256
        %s258 = smul.u32 64, %s26
        %s259 = smul.u32 4, %s28
        %s260 = smul.u32 64, %s26
        %p262 = scmp.eq.s32.totalorder %s28, 0
        // Predicated region
        $region45: #{_conv_call.1} parent=31 // pred_check
          %p263 = pneg %p262
        $region46: #{_conv_call.1} parent=31 // pred_check_branch
          %265 = sbr.rel (%p263) target = $region48
        $region47: #{_conv_call.1} parent=31 // pred_region
          %266 = vst [vmem:[#allocation2] sm:$0xff] 0.0
          %267 = vst [vmem:[#allocation2 + $0x8] sm:$0xff] 0.0
          %268 = vst [vmem:[#allocation2 + $0x10] sm:$0xff] 0.0
          %269 = vst [vmem:[#allocation2 + $0x18] sm:$0xff] 0.0
          %270 = vst [vmem:[#allocation2 + $0x20] sm:$0xff] 0.0
          %271 = vst [vmem:[#allocation2 + $0x28] sm:$0xff] 0.0
          %272 = vst [vmem:[#allocation2 + $0x30] sm:$0xff] 0.0
          %273 = vst [vmem:[#allocation2 + $0x38] sm:$0xff] 0.0
          %274 = vst [vmem:[#allocation2 + $0x40] sm:$0xff] 0.0
          %275 = vst [vmem:[#allocation2 + $0x48] sm:$0xff] 0.0
          %276 = vst [vmem:[#allocation2 + $0x50] sm:$0xff] 0.0
          %277 = vst [vmem:[#allocation2 + $0x58] sm:$0xff] 0.0
          %278 = vst [vmem:[#allocation2 + $0x60] sm:$0xff] 0.0
          %279 = vst [vmem:[#allocation2 + $0x68] sm:$0xff] 0.0
          %280 = vst [vmem:[#allocation2 + $0x70] sm:$0xff] 0.0
          %281 = vst [vmem:[#allocation2 + $0x78] sm:$0xff] 0.0
          %282 = vst [vmem:[#allocation2 + $0x80] sm:$0xff] 0.0
          %283 = vst [vmem:[#allocation2 + $0x88] sm:$0xff] 0.0
          %284 = vst [vmem:[#allocation2 + $0x90] sm:$0xff] 0.0
          %285 = vst [vmem:[#allocation2 + $0x98] sm:$0xff] 0.0
          %286 = vst [vmem:[#allocation2 + $0xa0] sm:$0xff] 0.0
          %287 = vst [vmem:[#allocation2 + $0xa8] sm:$0xff] 0.0
          %288 = vst [vmem:[#allocation2 + $0xb0] sm:$0xff] 0.0
          %289 = vst [vmem:[#allocation2 + $0xb8] sm:$0xff] 0.0
          %290 = vst [vmem:[#allocation2 + $0xc0] sm:$0xff] 0.0
          %291 = vst [vmem:[#allocation2 + $0xc8] sm:$0xff] 0.0
          %292 = vst [vmem:[#allocation2 + $0xd0] sm:$0xff] 0.0
          %293 = vst [vmem:[#allocation2 + $0xd8] sm:$0xff] 0.0
          %294 = vst [vmem:[#allocation2 + $0xe0] sm:$0xff] 0.0
          %295 = vst [vmem:[#allocation2 + $0xe8] sm:$0xff] 0.0
          %296 = vst [vmem:[#allocation2 + $0xf0] sm:$0xff] 0.0
          %297 = vst [vmem:[#allocation2 + $0xf8] sm:$0xff] 0.0
          %298 = vst [vmem:[#allocation2 + $0x100] sm:$0xff] 0.0
          %299 = vst [vmem:[#allocation2 + $0x108] sm:$0xff] 0.0
          %300 = vst [vmem:[#allocation2 + $0x110] sm:$0xff] 0.0
          %301 = vst [vmem:[#allocation2 + $0x118] sm:$0xff] 0.0
          %302 = vst [vmem:[#allocation2 + $0x120] sm:$0xff] 0.0
          %303 = vst [vmem:[#allocation2 + $0x128] sm:$0xff] 0.0
          %304 = vst [vmem:[#allocation2 + $0x130] sm:$0xff] 0.0
          %305 = vst [vmem:[#allocation2 + $0x138] sm:$0xff] 0.0
          %306 = vst [vmem:[#allocation2 + $0x140] sm:$0xff] 0.0
          %307 = vst [vmem:[#allocation2 + $0x148] sm:$0xff] 0.0
          %308 = vst [vmem:[#allocation2 + $0x150] sm:$0xff] 0.0
          %309 = vst [vmem:[#allocation2 + $0x158] sm:$0xff] 0.0
          %310 = vst [vmem:[#allocation2 + $0x160] sm:$0xff] 0.0
          %311 = vst [vmem:[#allocation2 + $0x168] sm:$0xff] 0.0
          %312 = vst [vmem:[#allocation2 + $0x170] sm:$0xff] 0.0
          %313 = vst [vmem:[#allocation2 + $0x178] sm:$0xff] 0.0
          %314 = vst [vmem:[#allocation2 + $0x180] sm:$0xff] 0.0
          %315 = vst [vmem:[#allocation2 + $0x188] sm:$0xff] 0.0
          %316 = vst [vmem:[#allocation2 + $0x190] sm:$0xff] 0.0
          %317 = vst [vmem:[#allocation2 + $0x198] sm:$0xff] 0.0
          %318 = vst [vmem:[#allocation2 + $0x1a0] sm:$0xff] 0.0
          %319 = vst [vmem:[#allocation2 + $0x1a8] sm:$0xff] 0.0
          %320 = vst [vmem:[#allocation2 + $0x1b0] sm:$0xff] 0.0
          %321 = vst [vmem:[#allocation2 + $0x1b8] sm:$0xff] 0.0
          %322 = vst [vmem:[#allocation2 + $0x1c0] sm:$0xff] 0.0
          %323 = vst [vmem:[#allocation2 + $0x1c8] sm:$0xff] 0.0
          %324 = vst [vmem:[#allocation2 + $0x1d0] sm:$0xff] 0.0
          %325 = vst [vmem:[#allocation2 + $0x1d8] sm:$0xff] 0.0
          %326 = vst [vmem:[#allocation2 + $0x1e0] sm:$0xff] 0.0
          %327 = vst [vmem:[#allocation2 + $0x1e8] sm:$0xff] 0.0
          %328 = vst [vmem:[#allocation2 + $0x1f0] sm:$0xff] 0.0
          %329 = vst [vmem:[#allocation2 + $0x1f8] sm:$0xff] 0.0
        $region48: #{_conv_call.1} parent=31 // pred_fallthru
          _
        %v330 = vld [vmem:[#allocation2] sm:$0xff]
        %v331 = vld [vmem:[#allocation2 + $0x8] sm:$0xff]
        %v332 = vld [vmem:[#allocation2 + $0x10] sm:$0xff]
        %v333 = vld [vmem:[#allocation2 + $0x18] sm:$0xff]
        %v334 = vld [vmem:[#allocation2 + $0x20] sm:$0xff]
        %v335 = vld [vmem:[#allocation2 + $0x28] sm:$0xff]
        %v336 = vld [vmem:[#allocation2 + $0x30] sm:$0xff]
        %v337 = vld [vmem:[#allocation2 + $0x38] sm:$0xff]
        %v338 = vld [vmem:[#allocation2 + $0x40] sm:$0xff]
        %v339 = vld [vmem:[#allocation2 + $0x48] sm:$0xff]
        %v340 = vld [vmem:[#allocation2 + $0x50] sm:$0xff]
        %v341 = vld [vmem:[#allocation2 + $0x58] sm:$0xff]
        %v342 = vld [vmem:[#allocation2 + $0x60] sm:$0xff]
        %v343 = vld [vmem:[#allocation2 + $0x68] sm:$0xff]
        %v344 = vld [vmem:[#allocation2 + $0x70] sm:$0xff]
        %v345 = vld [vmem:[#allocation2 + $0x78] sm:$0xff]
        %v346 = vld [vmem:[#allocation2 + $0x80] sm:$0xff]
        %v347 = vld [vmem:[#allocation2 + $0x88] sm:$0xff]
        %v348 = vld [vmem:[#allocation2 + $0x90] sm:$0xff]
        %v349 = vld [vmem:[#allocation2 + $0x98] sm:$0xff]
        %v350 = vld [vmem:[#allocation2 + $0xa0] sm:$0xff]
        %v351 = vld [vmem:[#allocation2 + $0xa8] sm:$0xff]
        %v352 = vld [vmem:[#allocation2 + $0xb0] sm:$0xff]
        %v353 = vld [vmem:[#allocation2 + $0xb8] sm:$0xff]
        %v354 = vld [vmem:[#allocation2 + $0xc0] sm:$0xff]
        %v355 = vld [vmem:[#allocation2 + $0xc8] sm:$0xff]
        %v356 = vld [vmem:[#allocation2 + $0xd0] sm:$0xff]
        %v357 = vld [vmem:[#allocation2 + $0xd8] sm:$0xff]
        %v358 = vld [vmem:[#allocation2 + $0xe0] sm:$0xff]
        %v359 = vld [vmem:[#allocation2 + $0xe8] sm:$0xff]
        %v360 = vld [vmem:[#allocation2 + $0xf0] sm:$0xff]
        %v361 = vld [vmem:[#allocation2 + $0xf8] sm:$0xff]
        %v362 = vld [vmem:[#allocation2 + $0x100] sm:$0xff]
        %v363 = vld [vmem:[#allocation2 + $0x108] sm:$0xff]
        %v364 = vld [vmem:[#allocation2 + $0x110] sm:$0xff]
        %v365 = vld [vmem:[#allocation2 + $0x118] sm:$0xff]
        %v366 = vld [vmem:[#allocation2 + $0x120] sm:$0xff]
        %v367 = vld [vmem:[#allocation2 + $0x128] sm:$0xff]
        %v368 = vld [vmem:[#allocation2 + $0x130] sm:$0xff]
        %v369 = vld [vmem:[#allocation2 + $0x138] sm:$0xff]
        %v370 = vld [vmem:[#allocation2 + $0x140] sm:$0xff]
        %v371 = vld [vmem:[#allocation2 + $0x148] sm:$0xff]
        %v372 = vld [vmem:[#allocation2 + $0x150] sm:$0xff]
        %v373 = vld [vmem:[#allocation2 + $0x158] sm:$0xff]
        %v374 = vld [vmem:[#allocation2 + $0x160] sm:$0xff]
        %v375 = vld [vmem:[#allocation2 + $0x168] sm:$0xff]
        %v376 = vld [vmem:[#allocation2 + $0x170] sm:$0xff]
        %v377 = vld [vmem:[#allocation2 + $0x178] sm:$0xff]
        %v378 = vld [vmem:[#allocation2 + $0x180] sm:$0xff]
        %v379 = vld [vmem:[#allocation2 + $0x188] sm:$0xff]
        %v380 = vld [vmem:[#allocation2 + $0x190] sm:$0xff]
        %v381 = vld [vmem:[#allocation2 + $0x198] sm:$0xff]
        %v382 = vld [vmem:[#allocation2 + $0x1a0] sm:$0xff]
        %v383 = vld [vmem:[#allocation2 + $0x1a8] sm:$0xff]
        %v384 = vld [vmem:[#allocation2 + $0x1b0] sm:$0xff]
        %v385 = vld [vmem:[#allocation2 + $0x1b8] sm:$0xff]
        %v386 = vld [vmem:[#allocation2 + $0x1c0] sm:$0xff]
        %v387 = vld [vmem:[#allocation2 + $0x1c8] sm:$0xff]
        %v388 = vld [vmem:[#allocation2 + $0x1d0] sm:$0xff]
        %v389 = vld [vmem:[#allocation2 + $0x1d8] sm:$0xff]
        %v390 = vld [vmem:[#allocation2 + $0x1e0] sm:$0xff]
        %v391 = vld [vmem:[#allocation2 + $0x1e8] sm:$0xff]
        %v392 = vld [vmem:[#allocation2 + $0x1f0] sm:$0xff]
        %v393 = vld [vmem:[#allocation2 + $0x1f8] sm:$0xff]
        %v394 = vld [vmem:[%s227] sm:$0xf]
        %v395 = vld [vmem:[%s227 + $0x4] sm:$0xf]
        %v396 = vld [vmem:[%s227 + $0x8] sm:$0xf]
        %v397 = vld [vmem:[%s227 + $0xc] sm:$0xf]
        %v398 = vld [vmem:[%s227 + $0x10] sm:$0xf]
        %v399 = vld [vmem:[%s227 + $0x14] sm:$0xf]
        %v400 = vld [vmem:[%s227 + $0x18] sm:$0xf]
        %v401 = vld [vmem:[%s227 + $0x1c] sm:$0xf]
        %v402 = vld [vmem:[%s227 + $0x20] sm:$0xf]
        %v403 = vld [vmem:[%s227 + $0x24] sm:$0xf]
        %v404 = vld [vmem:[%s227 + $0x28] sm:$0xf]
        %v405 = vld [vmem:[%s227 + $0x2c] sm:$0xf]
        %v406 = vld [vmem:[%s227 + $0x30] sm:$0xf]
        %v407 = vld [vmem:[%s227 + $0x34] sm:$0xf]
        %v408 = vld [vmem:[%s227 + $0x38] sm:$0xf]
        %v409 = vld [vmem:[%s227 + $0x3c] sm:$0xf]
        %v410 = vld [vmem:[%s227 + $0x40] sm:$0xf]
        %v411 = vld [vmem:[%s227 + $0x44] sm:$0xf]
        %v412 = vld [vmem:[%s227 + $0x48] sm:$0xf]
        %v413 = vld [vmem:[%s227 + $0x4c] sm:$0xf]
        %v414 = vld [vmem:[%s227 + $0x50] sm:$0xf]
        %v415 = vld [vmem:[%s227 + $0x54] sm:$0xf]
        %v416 = vld [vmem:[%s227 + $0x58] sm:$0xf]
        %v417 = vld [vmem:[%s227 + $0x5c] sm:$0xf]
        %v418 = vld [vmem:[%s227 + $0x60] sm:$0xf]
        %v419 = vld [vmem:[%s227 + $0x64] sm:$0xf]
        %v420 = vld [vmem:[%s227 + $0x68] sm:$0xf]
        %v421 = vld [vmem:[%s227 + $0x6c] sm:$0xf]
        %v422 = vld [vmem:[%s227 + $0x70] sm:$0xf]
        %v423 = vld [vmem:[%s227 + $0x74] sm:$0xf]
        %v424 = vld [vmem:[%s227 + $0x78] sm:$0xf]
        %v425 = vld [vmem:[%s227 + $0x7c] sm:$0xf]
        %v426 = vld [vmem:[%s227 + $0x80] sm:$0xf]
        %v427 = vld [vmem:[%s227 + $0x84] sm:$0xf]
        %v428 = vld [vmem:[%s227 + $0x88] sm:$0xf]
        %v429 = vld [vmem:[%s227 + $0x8c] sm:$0xf]
        %v430 = vld [vmem:[%s227 + $0x90] sm:$0xf]
        %v431 = vld [vmem:[%s227 + $0x94] sm:$0xf]
        %v432 = vld [vmem:[%s227 + $0x98] sm:$0xf]
        %v433 = vld [vmem:[%s227 + $0x9c] sm:$0xf]
        %v434 = vld [vmem:[%s227 + $0xa0] sm:$0xf]
        %v435 = vld [vmem:[%s227 + $0xa4] sm:$0xf]
        %v436 = vld [vmem:[%s227 + $0xa8] sm:$0xf]
        %v437 = vld [vmem:[%s227 + $0xac] sm:$0xf]
        %v438 = vld [vmem:[%s227 + $0xb0] sm:$0xf]
        %v439 = vld [vmem:[%s227 + $0xb4] sm:$0xf]
        %v440 = vld [vmem:[%s227 + $0xb8] sm:$0xf]
        %v441 = vld [vmem:[%s227 + $0xbc] sm:$0xf]
        %v442 = vld [vmem:[%s227 + $0xc0] sm:$0xf]
        %v443 = vld [vmem:[%s227 + $0xc4] sm:$0xf]
        %v444 = vld [vmem:[%s227 + $0xc8] sm:$0xf]
        %v445 = vld [vmem:[%s227 + $0xcc] sm:$0xf]
        %v446 = vld [vmem:[%s227 + $0xd0] sm:$0xf]
        %v447 = vld [vmem:[%s227 + $0xd4] sm:$0xf]
        %v448 = vld [vmem:[%s227 + $0xd8] sm:$0xf]
        %v449 = vld [vmem:[%s227 + $0xdc] sm:$0xf]
        %v450 = vld [vmem:[%s227 + $0xe0] sm:$0xf]
        %v451 = vld [vmem:[%s227 + $0xe4] sm:$0xf]
        %v452 = vld [vmem:[%s227 + $0xe8] sm:$0xf]
        %v453 = vld [vmem:[%s227 + $0xec] sm:$0xf]
        %v454 = vld [vmem:[%s227 + $0xf0] sm:$0xf]
        %v455 = vld [vmem:[%s227 + $0xf4] sm:$0xf]
        %v456 = vld [vmem:[%s227 + $0xf8] sm:$0xf]
        %v457 = vld [vmem:[%s227 + $0xfc] sm:$0xf]
        %v458 = vld [vmem:[#allocation6] sm:$0xf]
        %v459 = vld [vmem:[#allocation6 + $0x4] sm:$0xf]
        %v460 = vld [vmem:[#allocation6 + $0x8] sm:$0xf]
        %v461 = vld [vmem:[#allocation6 + $0xc] sm:$0x3]
        %v526 = vunpack.c.l.b16 %v394
        %v527 = vunpack.c.l.b16 %v395
        %v528 = vunpack.c.l.b16 %v396
        %v529 = vunpack.c.l.b16 %v397
        %v530 = vunpack.c.l.b16 %v398
        %v531 = vunpack.c.l.b16 %v399
        %v532 = vunpack.c.l.b16 %v400
        %v533 = vunpack.c.l.b16 %v401
        %v534 = vunpack.c.l.b16 %v402
        %v535 = vunpack.c.l.b16 %v403
        %v536 = vunpack.c.l.b16 %v404
        %v537 = vunpack.c.l.b16 %v405
        %v538 = vunpack.c.l.b16 %v406
        %v539 = vunpack.c.l.b16 %v407
        %v540 = vunpack.c.l.b16 %v408
        %v541 = vunpack.c.l.b16 %v409
        %v542 = vunpack.c.l.b16 %v410
        %v543 = vunpack.c.l.b16 %v411
        %v544 = vunpack.c.l.b16 %v412
        %v545 = vunpack.c.l.b16 %v413
        %v546 = vunpack.c.l.b16 %v414
        %v547 = vunpack.c.l.b16 %v415
        %v548 = vunpack.c.l.b16 %v416
        %v549 = vunpack.c.l.b16 %v417
        %v550 = vunpack.c.l.b16 %v418
        %v551 = vunpack.c.l.b16 %v419
        %v552 = vunpack.c.l.b16 %v420
        %v553 = vunpack.c.l.b16 %v421
        %v554 = vunpack.c.l.b16 %v422
        %v555 = vunpack.c.l.b16 %v423
        %v556 = vunpack.c.l.b16 %v424
        %v557 = vunpack.c.l.b16 %v425
        %v558 = vunpack.c.l.b16 %v426
        %v559 = vunpack.c.l.b16 %v427
        %v560 = vunpack.c.l.b16 %v428
        %v561 = vunpack.c.l.b16 %v429
        %v562 = vunpack.c.l.b16 %v430
        %v563 = vunpack.c.l.b16 %v431
        %v564 = vunpack.c.l.b16 %v432
        %v565 = vunpack.c.l.b16 %v433
        %v566 = vunpack.c.l.b16 %v434
        %v567 = vunpack.c.l.b16 %v435
        %v568 = vunpack.c.l.b16 %v436
        %v569 = vunpack.c.l.b16 %v437
        %v570 = vunpack.c.l.b16 %v438
        %v571 = vunpack.c.l.b16 %v439
        %v572 = vunpack.c.l.b16 %v440
        %v573 = vunpack.c.l.b16 %v441
        %v574 = vunpack.c.l.b16 %v442
        %v575 = vunpack.c.l.b16 %v443
        %v576 = vunpack.c.l.b16 %v444
        %v577 = vunpack.c.l.b16 %v445
        %v578 = vunpack.c.l.b16 %v446
        %v579 = vunpack.c.l.b16 %v447
        %v580 = vunpack.c.l.b16 %v448
        %v581 = vunpack.c.l.b16 %v449
        %v582 = vunpack.c.l.b16 %v450
        %v583 = vunpack.c.l.b16 %v451
        %v584 = vunpack.c.l.b16 %v452
        %v585 = vunpack.c.l.b16 %v453
        %v586 = vunpack.c.l.b16 %v454
        %v587 = vunpack.c.l.b16 %v455
        %v588 = vunpack.c.l.b16 %v456
        %v589 = vunpack.c.l.b16 %v457
        %v590 = vpack.c.b16 %v527, %v526
        %v591 = vpack.c.b16 %v529, %v528
        %v592 = vpack.c.b16 %v531, %v530
        %v593 = vpack.c.b16 %v533, %v532
        %v594 = vpack.c.b16 %v535, %v534
        %v595 = vpack.c.b16 %v537, %v536
        %v596 = vpack.c.b16 %v539, %v538
        %v597 = vpack.c.b16 %v541, %v540
        %v598 = vpack.c.b16 %v543, %v542
        %v599 = vpack.c.b16 %v545, %v544
        %v600 = vpack.c.b16 %v547, %v546
        %v601 = vpack.c.b16 %v549, %v548
        %v602 = vpack.c.b16 %v551, %v550
        %v603 = vpack.c.b16 %v553, %v552
        %v604 = vpack.c.b16 %v555, %v554
        %v605 = vpack.c.b16 %v557, %v556
        %v606 = vpack.c.b16 %v559, %v558
        %v607 = vpack.c.b16 %v561, %v560
        %v608 = vpack.c.b16 %v563, %v562
        %v609 = vpack.c.b16 %v565, %v564
        %v610 = vpack.c.b16 %v567, %v566
        %v611 = vpack.c.b16 %v569, %v568
        %v612 = vpack.c.b16 %v571, %v570
        %v613 = vpack.c.b16 %v573, %v572
        %v614 = vpack.c.b16 %v575, %v574
        %v615 = vpack.c.b16 %v577, %v576
        %v616 = vpack.c.b16 %v579, %v578
        %v617 = vpack.c.b16 %v581, %v580
        %v618 = vpack.c.b16 %v583, %v582
        %v619 = vpack.c.b16 %v585, %v584
        %v620 = vpack.c.b16 %v587, %v586
        %v621 = vpack.c.b16 %v589, %v588
        %v626 = vunpack.c.l.b16 %v458
        %v627 = vunpack.c.l.b16 %v459
        %v628 = vunpack.c.l.b16 %v460
        %v629 = vunpack.c.l.b16 %v461
        %v630 = vpack.c.b16 %v627, %v626
        %v631 = vpack.c.b16 %v629, %v628
        %vm633 = vcmask 220160
        %v635 = vsel %vm633, %v590, 0
        %v638 = vsel %vm633, %v591, 0
        %v641 = vsel %vm633, %v592, 0
        %v644 = vsel %vm633, %v593, 0
        %v647 = vsel %vm633, %v594, 0
        %v650 = vsel %vm633, %v595, 0
        %v653 = vsel %vm633, %v596, 0
        %v656 = vsel %vm633, %v597, 0
        %v659 = vsel %vm633, %v598, 0
        %v662 = vsel %vm633, %v599, 0
        %v665 = vsel %vm633, %v600, 0
        %v668 = vsel %vm633, %v601, 0
        %v671 = vsel %vm633, %v602, 0
        %v674 = vsel %vm633, %v603, 0
        %v677 = vsel %vm633, %v604, 0
        %v680 = vsel %vm633, %v605, 0
        %v683 = vsel %vm633, %v606, 0
        %v686 = vsel %vm633, %v607, 0
        %v689 = vsel %vm633, %v608, 0
        %v692 = vsel %vm633, %v609, 0
        %v695 = vsel %vm633, %v610, 0
        %v698 = vsel %vm633, %v611, 0
        %v701 = vsel %vm633, %v612, 0
        %v704 = vsel %vm633, %v613, 0
        %v707 = vsel %vm633, %v614, 0
        %v710 = vsel %vm633, %v615, 0
        %v713 = vsel %vm633, %v616, 0
        %v716 = vsel %vm633, %v617, 0
        %v719 = vsel %vm633, %v618, 0
        %v722 = vsel %vm633, %v619, 0
        %v725 = vsel %vm633, %v620, 0
        %v728 = vsel %vm633, %v621, 0
        %vm730 = vcmask 1044480
        %vm731 = vcmask 1045504
        %v732 = vsel %vm730, 4294967295, 65535
        %v733 = vsel %vm731, %v732, 0
        %v735 = vand.u32 %v631, %v733
        %737 = vmatprep.subr.bf16.mxu0 0
        %738 = vmatpush1.bf16.msra.mxu0 %v630
        %739 = vmatprep.subr.bf16.mxu0 0
        %740 = vmatpush1.bf16.msra.mxu0 %v735
        %741 = vmatprep.subr.bf16.mxu0 0
        %742 = vmatpush1.bf16.msra.mxu0 0
        %743 = vmatprep.subr.bf16.mxu0 0
        %744 = vmatpush1.bf16.msra.mxu0 0
        %745 = vmatprep.subr.bf16.mxu0 0
        %746 = vmatpush1.bf16.msra.mxu0 0
        %747 = vmatprep.subr.bf16.mxu0 0
        %748 = vmatpush1.bf16.msra.mxu0 0
        %749 = vmatprep.subr.bf16.mxu0 0
        %750 = vmatpush1.bf16.msra.mxu0 0
        %751 = vmatprep.subr.bf16.mxu0 0
        %752 = vmatpush1.bf16.msra.mxu0 0
        %753 = vmatprep.subr.bf16.mxu0 0
        %754 = vmatpush1.bf16.msra.mxu0 0
        %755 = vmatprep.subr.bf16.mxu0 0
        %756 = vmatpush1.bf16.msra.mxu0 0
        %757 = vmatprep.subr.bf16.mxu0 0
        %758 = vmatpush1.bf16.msra.mxu0 0
        %759 = vmatprep.subr.bf16.mxu0 0
        %760 = vmatpush1.bf16.msra.mxu0 0
        %761 = vmatprep.subr.bf16.mxu0 0
        %762 = vmatpush1.bf16.msra.mxu0 0
        %763 = vmatprep.subr.bf16.mxu0 0
        %764 = vmatpush1.bf16.msra.mxu0 0
        %765 = vmatprep.subr.bf16.mxu0 0
        %766 = vmatpush1.bf16.msra.mxu0 0
        %767 = vmatprep.subr.bf16.mxu0 0
        %768 = vmatpush1.bf16.msra.mxu0 0
        %769 = vmatprep.mubr.bf16.mxu0 0
        %770 = vmatmul.mubr.bf16.gmra.mrb[0].mxu0 %v635
        %v771 = vpop.f32.mrb[0].mxu0
        %v772 = vadd.f32 0.0, %v771
        %v773 = vpop.f32.mrb[0].mxu0
        %v774 = vpop.f32.mrb[0].mxu0
        %v775 = vadd.f32 0.0, %v774
        %v776 = vpop.f32.mrb[0].mxu0
        %777 = vmatprep.mubr.bf16.mxu0 0
        %778 = vmatmul.mubr.bf16.gmra.mrb[0].mxu0 %v638
        %v779 = vpop.f32.mrb[0].mxu0
        %v780 = vadd.f32 0.0, %v779
        %v781 = vpop.f32.mrb[0].mxu0
        %v782 = vpop.f32.mrb[0].mxu0
        %v783 = vadd.f32 0.0, %v782
        %v784 = vpop.f32.mrb[0].mxu0
        %785 = vmatprep.mubr.bf16.mxu0 0
        %786 = vmatmul.mubr.bf16.gmra.mrb[0].mxu0 %v641
        %v787 = vpop.f32.mrb[0].mxu0
        %v788 = vadd.f32 0.0, %v787
        %v789 = vpop.f32.mrb[0].mxu0
        %v790 = vpop.f32.mrb[0].mxu0
        %v791 = vadd.f32 0.0, %v790
        %v792 = vpop.f32.mrb[0].mxu0
        %793 = vmatprep.mubr.bf16.mxu0 0
        %794 = vmatmul.mubr.bf16.gmra.mrb[0].mxu0 %v644
        %v795 = vpop.f32.mrb[0].mxu0
        %v796 = vadd.f32 0.0, %v795
        %v797 = vpop.f32.mrb[0].mxu0
        %v798 = vpop.f32.mrb[0].mxu0
        %v799 = vadd.f32 0.0, %v798
        %v800 = vpop.f32.mrb[0].mxu0
        %801 = vmatprep.mubr.bf16.mxu0 0
        %802 = vmatmul.mubr.bf16.gmra.mrb[0].mxu0 %v647
        %v803 = vpop.f32.mrb[0].mxu0
        %v804 = vadd.f32 0.0, %v803
        %v805 = vpop.f32.mrb[0].mxu0
        %v806 = vpop.f32.mrb[0].mxu0
        %v807 = vadd.f32 0.0, %v806
        %v808 = vpop.f32.mrb[0].mxu0
        %809 = vmatprep.mubr.bf16.mxu0 0
        %810 = vmatmul.mubr.bf16.gmra.mrb[0].mxu0 %v650
        %v811 = vpop.f32.mrb[0].mxu0
        %v812 = vadd.f32 0.0, %v811
        %v813 = vpop.f32.mrb[0].mxu0
        %v814 = vpop.f32.mrb[0].mxu0
        %v815 = vadd.f32 0.0, %v814
        %v816 = vpop.f32.mrb[0].mxu0
        %817 = vmatprep.mubr.bf16.mxu0 0
        %818 = vmatmul.mubr.bf16.gmra.mrb[0].mxu0 %v653
        %v819 = vpop.f32.mrb[0].mxu0
        %v820 = vadd.f32 0.0, %v819
        %v821 = vpop.f32.mrb[0].mxu0
        %v822 = vpop.f32.mrb[0].mxu0
        %v823 = vadd.f32 0.0, %v822
        %v824 = vpop.f32.mrb[0].mxu0
        %825 = vmatprep.mubr.bf16.mxu0 0
        %826 = vmatmul.mubr.bf16.gmra.mrb[0].mxu0 %v656
        %v827 = vpop.f32.mrb[0].mxu0
        %v828 = vadd.f32 0.0, %v827
        %v829 = vpop.f32.mrb[0].mxu0
        %v830 = vpop.f32.mrb[0].mxu0
        %v831 = vadd.f32 0.0, %v830
        %v832 = vpop.f32.mrb[0].mxu0
        %833 = vmatprep.mubr.bf16.mxu0 0
        %834 = vmatmul.mubr.bf16.gmra.mrb[0].mxu0 %v659
        %v835 = vpop.f32.mrb[0].mxu0
        %v836 = vadd.f32 0.0, %v835
        %v837 = vpop.f32.mrb[0].mxu0
        %v838 = vpop.f32.mrb[0].mxu0
        %v839 = vadd.f32 0.0, %v838
        %v840 = vpop.f32.mrb[0].mxu0
        %841 = vmatprep.mubr.bf16.mxu0 0
        %842 = vmatmul.mubr.bf16.gmra.mrb[0].mxu0 %v662
        %v843 = vpop.f32.mrb[0].mxu0
        %v844 = vadd.f32 0.0, %v843
        %v845 = vpop.f32.mrb[0].mxu0
        %v846 = vpop.f32.mrb[0].mxu0
        %v847 = vadd.f32 0.0, %v846
        %v848 = vpop.f32.mrb[0].mxu0
        %849 = vmatprep.mubr.bf16.mxu0 0
        %850 = vmatmul.mubr.bf16.gmra.mrb[0].mxu0 %v665
        %v851 = vpop.f32.mrb[0].mxu0
        %v852 = vadd.f32 0.0, %v851
        %v853 = vpop.f32.mrb[0].mxu0
        %v854 = vpop.f32.mrb[0].mxu0
        %v855 = vadd.f32 0.0, %v854
        %v856 = vpop.f32.mrb[0].mxu0
        %857 = vmatprep.mubr.bf16.mxu0 0
        %858 = vmatmul.mubr.bf16.gmra.mrb[0].mxu0 %v668
        %v859 = vpop.f32.mrb[0].mxu0
        %v860 = vadd.f32 0.0, %v859
        %v861 = vpop.f32.mrb[0].mxu0
        %v862 = vpop.f32.mrb[0].mxu0
        %v863 = vadd.f32 0.0, %v862
        %v864 = vpop.f32.mrb[0].mxu0
        %865 = vmatprep.mubr.bf16.mxu0 0
        %866 = vmatmul.mubr.bf16.gmra.mrb[0].mxu0 %v671
        %v867 = vpop.f32.mrb[0].mxu0
        %v868 = vadd.f32 0.0, %v867
        %v869 = vpop.f32.mrb[0].mxu0
        %v870 = vpop.f32.mrb[0].mxu0
        %v871 = vadd.f32 0.0, %v870
        %v872 = vpop.f32.mrb[0].mxu0
        %873 = vmatprep.mubr.bf16.mxu0 0
        %874 = vmatmul.mubr.bf16.gmra.mrb[0].mxu0 %v674
        %v875 = vpop.f32.mrb[0].mxu0
        %v876 = vadd.f32 0.0, %v875
        %v877 = vpop.f32.mrb[0].mxu0
        %v878 = vpop.f32.mrb[0].mxu0
        %v879 = vadd.f32 0.0, %v878
        %v880 = vpop.f32.mrb[0].mxu0
        %881 = vmatprep.mubr.bf16.mxu0 0
        %882 = vmatmul.mubr.bf16.gmra.mrb[0].mxu0 %v677
        %v883 = vpop.f32.mrb[0].mxu0
        %v884 = vadd.f32 0.0, %v883
        %v885 = vpop.f32.mrb[0].mxu0
        %v886 = vpop.f32.mrb[0].mxu0
        %v887 = vadd.f32 0.0, %v886
        %v888 = vpop.f32.mrb[0].mxu0
        %889 = vmatprep.mubr.bf16.mxu0 0
        %890 = vmatmul.mubr.bf16.gmra.mrb[0].mxu0 %v680
        %v891 = vpop.f32.mrb[0].mxu0
        %v892 = vadd.f32 0.0, %v891
        %v893 = vpop.f32.mrb[0].mxu0
        %v894 = vpop.f32.mrb[0].mxu0
        %v895 = vadd.f32 0.0, %v894
        %v896 = vpop.f32.mrb[0].mxu0
        %897 = vmatprep.mubr.bf16.mxu0 0
        %898 = vmatmul.mubr.bf16.gmra.mrb[0].mxu0 %v683
        %v899 = vpop.f32.mrb[0].mxu0
        %v900 = vadd.f32 0.0, %v899
        %v901 = vpop.f32.mrb[0].mxu0
        %v902 = vpop.f32.mrb[0].mxu0
        %v903 = vadd.f32 0.0, %v902
        %v904 = vpop.f32.mrb[0].mxu0
        %905 = vmatprep.mubr.bf16.mxu0 0
        %906 = vmatmul.mubr.bf16.gmra.mrb[0].mxu0 %v686
        %v907 = vpop.f32.mrb[0].mxu0
        %v908 = vadd.f32 0.0, %v907
        %v909 = vpop.f32.mrb[0].mxu0
        %v910 = vpop.f32.mrb[0].mxu0
        %v911 = vadd.f32 0.0, %v910
        %v912 = vpop.f32.mrb[0].mxu0
        %913 = vmatprep.mubr.bf16.mxu0 0
        %914 = vmatmul.mubr.bf16.gmra.mrb[0].mxu0 %v689
        %v915 = vpop.f32.mrb[0].mxu0
        %v916 = vadd.f32 0.0, %v915
        %v917 = vpop.f32.mrb[0].mxu0
        %v918 = vpop.f32.mrb[0].mxu0
        %v919 = vadd.f32 0.0, %v918
        %v920 = vpop.f32.mrb[0].mxu0
        %921 = vmatprep.mubr.bf16.mxu0 0
        %922 = vmatmul.mubr.bf16.gmra.mrb[0].mxu0 %v692
        %v923 = vpop.f32.mrb[0].mxu0
        %v924 = vadd.f32 0.0, %v923
        %v925 = vpop.f32.mrb[0].mxu0
        %v926 = vpop.f32.mrb[0].mxu0
        %v927 = vadd.f32 0.0, %v926
        %v928 = vpop.f32.mrb[0].mxu0
        %929 = vmatprep.mubr.bf16.mxu0 0
        %930 = vmatmul.mubr.bf16.gmra.mrb[0].mxu0 %v695
        %v931 = vpop.f32.mrb[0].mxu0
        %v932 = vadd.f32 0.0, %v931
        %v933 = vpop.f32.mrb[0].mxu0
        %v934 = vpop.f32.mrb[0].mxu0
        %v935 = vadd.f32 0.0, %v934
        %v936 = vpop.f32.mrb[0].mxu0
        %937 = vmatprep.mubr.bf16.mxu0 0
        %938 = vmatmul.mubr.bf16.gmra.mrb[0].mxu0 %v698
        %v939 = vpop.f32.mrb[0].mxu0
        %v940 = vadd.f32 0.0, %v939
        %v941 = vpop.f32.mrb[0].mxu0
        %v942 = vpop.f32.mrb[0].mxu0
        %v943 = vadd.f32 0.0, %v942
        %v944 = vpop.f32.mrb[0].mxu0
        %945 = vmatprep.mubr.bf16.mxu0 0
        %946 = vmatmul.mubr.bf16.gmra.mrb[0].mxu0 %v701
        %v947 = vpop.f32.mrb[0].mxu0
        %v948 = vadd.f32 0.0, %v947
        %v949 = vpop.f32.mrb[0].mxu0
        %v950 = vpop.f32.mrb[0].mxu0
        %v951 = vadd.f32 0.0, %v950
        %v952 = vpop.f32.mrb[0].mxu0
        %953 = vmatprep.mubr.bf16.mxu0 0
        %954 = vmatmul.mubr.bf16.gmra.mrb[0].mxu0 %v704
        %v955 = vpop.f32.mrb[0].mxu0
        %v956 = vadd.f32 0.0, %v955
        %v957 = vpop.f32.mrb[0].mxu0
        %v958 = vpop.f32.mrb[0].mxu0
        %v959 = vadd.f32 0.0, %v958
        %v960 = vpop.f32.mrb[0].mxu0
        %961 = vmatprep.mubr.bf16.mxu0 0
        %962 = vmatmul.mubr.bf16.gmra.mrb[0].mxu0 %v707
        %v963 = vpop.f32.mrb[0].mxu0
        %v964 = vadd.f32 0.0, %v963
        %v965 = vpop.f32.mrb[0].mxu0
        %v966 = vpop.f32.mrb[0].mxu0
        %v967 = vadd.f32 0.0, %v966
        %v968 = vpop.f32.mrb[0].mxu0
        %969 = vmatprep.mubr.bf16.mxu0 0
        %970 = vmatmul.mubr.bf16.gmra.mrb[0].mxu0 %v710
        %v971 = vpop.f32.mrb[0].mxu0
        %v972 = vadd.f32 0.0, %v971
        %v973 = vpop.f32.mrb[0].mxu0
        %v974 = vpop.f32.mrb[0].mxu0
        %v975 = vadd.f32 0.0, %v974
        %v976 = vpop.f32.mrb[0].mxu0
        %977 = vmatprep.mubr.bf16.mxu0 0
        %978 = vmatmul.mubr.bf16.gmra.mrb[0].mxu0 %v713
        %v979 = vpop.f32.mrb[0].mxu0
        %v980 = vadd.f32 0.0, %v979
        %v981 = vpop.f32.mrb[0].mxu0
        %v982 = vpop.f32.mrb[0].mxu0
        %v983 = vadd.f32 0.0, %v982
        %v984 = vpop.f32.mrb[0].mxu0
        %985 = vmatprep.mubr.bf16.mxu0 0
        %986 = vmatmul.mubr.bf16.gmra.mrb[0].mxu0 %v716
        %v987 = vpop.f32.mrb[0].mxu0
        %v988 = vadd.f32 0.0, %v987
        %v989 = vpop.f32.mrb[0].mxu0
        %v990 = vpop.f32.mrb[0].mxu0
        %v991 = vadd.f32 0.0, %v990
        %v992 = vpop.f32.mrb[0].mxu0
        %993 = vmatprep.mubr.bf16.mxu0 0
        %994 = vmatmul.mubr.bf16.gmra.mrb[0].mxu0 %v719
        %v995 = vpop.f32.mrb[0].mxu0
        %v996 = vadd.f32 0.0, %v995
        %v997 = vpop.f32.mrb[0].mxu0
        %v998 = vpop.f32.mrb[0].mxu0
        %v999 = vadd.f32 0.0, %v998
        %v1000 = vpop.f32.mrb[0].mxu0
        %1001 = vmatprep.mubr.bf16.mxu0 0
        %1002 = vmatmul.mubr.bf16.gmra.mrb[0].mxu0 %v722
        %v1003 = vpop.f32.mrb[0].mxu0
        %v1004 = vadd.f32 0.0, %v1003
        %v1005 = vpop.f32.mrb[0].mxu0
        %v1006 = vpop.f32.mrb[0].mxu0
        %v1007 = vadd.f32 0.0, %v1006
        %v1008 = vpop.f32.mrb[0].mxu0
        %1009 = vmatprep.mubr.bf16.mxu0 0
        %1010 = vmatmul.mubr.bf16.gmra.mrb[0].mxu0 %v725
        %v1011 = vpop.f32.mrb[0].mxu0
        %v1012 = vadd.f32 0.0, %v1011
        %v1013 = vpop.f32.mrb[0].mxu0
        %v1014 = vpop.f32.mrb[0].mxu0
        %v1015 = vadd.f32 0.0, %v1014
        %v1016 = vpop.f32.mrb[0].mxu0
        %1017 = vmatprep.mubr.bf16.mxu0 0
        %1018 = vmatmul.mubr.bf16.gmra.mrb[0].mxu0 %v728
        %v1019 = vpop.f32.mrb[0].mxu0
        %v1020 = vadd.f32 0.0, %v1019
        %v1021 = vpop.f32.mrb[0].mxu0
        %v1022 = vpop.f32.mrb[0].mxu0
        %v1023 = vadd.f32 0.0, %v1022
        %v1024 = vpop.f32.mrb[0].mxu0
        %1025 = vdwg.mxu0
        %v1026 = vadd.f32 %v330, %v772
        %v1027 = vadd.f32 %v331, %v775
        %v1028 = vadd.f32 %v332, %v780
        %v1029 = vadd.f32 %v333, %v783
        %v1030 = vadd.f32 %v334, %v788
        %v1031 = vadd.f32 %v335, %v791
        %v1032 = vadd.f32 %v336, %v796
        %v1033 = vadd.f32 %v337, %v799
        %v1034 = vadd.f32 %v338, %v804
        %v1035 = vadd.f32 %v339, %v807
        %v1036 = vadd.f32 %v340, %v812
        %v1037 = vadd.f32 %v341, %v815
        %v1038 = vadd.f32 %v342, %v820
        %v1039 = vadd.f32 %v343, %v823
        %v1040 = vadd.f32 %v344, %v828
        %v1041 = vadd.f32 %v345, %v831
        %v1042 = vadd.f32 %v346, %v836
        %v1043 = vadd.f32 %v347, %v839
        %v1044 = vadd.f32 %v348, %v844
        %v1045 = vadd.f32 %v349, %v847
        %v1046 = vadd.f32 %v350, %v852
        %v1047 = vadd.f32 %v351, %v855
        %v1048 = vadd.f32 %v352, %v860
        %v1049 = vadd.f32 %v353, %v863
        %v1050 = vadd.f32 %v354, %v868
        %v1051 = vadd.f32 %v355, %v871
        %v1052 = vadd.f32 %v356, %v876
        %v1053 = vadd.f32 %v357, %v879
        %v1054 = vadd.f32 %v358, %v884
        %v1055 = vadd.f32 %v359, %v887
        %v1056 = vadd.f32 %v360, %v892
        %v1057 = vadd.f32 %v361, %v895
        %v1058 = vadd.f32 %v362, %v900
        %v1059 = vadd.f32 %v363, %v903
        %v1060 = vadd.f32 %v364, %v908
        %v1061 = vadd.f32 %v365, %v911
        %v1062 = vadd.f32 %v366, %v916
        %v1063 = vadd.f32 %v367, %v919
        %v1064 = vadd.f32 %v368, %v924
        %v1065 = vadd.f32 %v369, %v927
        %v1066 = vadd.f32 %v370, %v932
        %v1067 = vadd.f32 %v371, %v935
        %v1068 = vadd.f32 %v372, %v940
        %v1069 = vadd.f32 %v373, %v943
        %v1070 = vadd.f32 %v374, %v948
        %v1071 = vadd.f32 %v375, %v951
        %v1072 = vadd.f32 %v376, %v956
        %v1073 = vadd.f32 %v377, %v959
        %v1074 = vadd.f32 %v378, %v964
        %v1075 = vadd.f32 %v379, %v967
        %v1076 = vadd.f32 %v380, %v972
        %v1077 = vadd.f32 %v381, %v975
        %v1078 = vadd.f32 %v382, %v980
        %v1079 = vadd.f32 %v383, %v983
        %v1080 = vadd.f32 %v384, %v988
        %v1081 = vadd.f32 %v385, %v991
        %v1082 = vadd.f32 %v386, %v996
        %v1083 = vadd.f32 %v387, %v999
        %v1084 = vadd.f32 %v388, %v1004
        %v1085 = vadd.f32 %v389, %v1007
        %v1086 = vadd.f32 %v390, %v1012
        %v1087 = vadd.f32 %v391, %v1015
        %v1088 = vadd.f32 %v392, %v1020
        %v1089 = vadd.f32 %v393, %v1023
        %1090 = vst [vmem:[#allocation2] sm:$0xff] %v1026
        %1091 = vst [vmem:[#allocation2 + $0x8] sm:$0xff] %v1027
        %1092 = vst [vmem:[#allocation2 + $0x10] sm:$0xff] %v1028
        %1093 = vst [vmem:[#allocation2 + $0x18] sm:$0xff] %v1029
        %1094 = vst [vmem:[#allocation2 + $0x20] sm:$0xff] %v1030
        %1095 = vst [vmem:[#allocation2 + $0x28] sm:$0xff] %v1031
        %1096 = vst [vmem:[#allocation2 + $0x30] sm:$0xff] %v1032
        %1097 = vst [vmem:[#allocation2 + $0x38] sm:$0xff] %v1033
        %1098 = vst [vmem:[#allocation2 + $0x40] sm:$0xff] %v1034
        %1099 = vst [vmem:[#allocation2 + $0x48] sm:$0xff] %v1035
        %1100 = vst [vmem:[#allocation2 + $0x50] sm:$0xff] %v1036
        %1101 = vst [vmem:[#allocation2 + $0x58] sm:$0xff] %v1037
        %1102 = vst [vmem:[#allocation2 + $0x60] sm:$0xff] %v1038
        %1103 = vst [vmem:[#allocation2 + $0x68] sm:$0xff] %v1039
        %1104 = vst [vmem:[#allocation2 + $0x70] sm:$0xff] %v1040
        %1105 = vst [vmem:[#allocation2 + $0x78] sm:$0xff] %v1041
        %1106 = vst [vmem:[#allocation2 + $0x80] sm:$0xff] %v1042
        %1107 = vst [vmem:[#allocation2 + $0x88] sm:$0xff] %v1043
        %1108 = vst [vmem:[#allocation2 + $0x90] sm:$0xff] %v1044
        %1109 = vst [vmem:[#allocation2 + $0x98] sm:$0xff] %v1045
        %1110 = vst [vmem:[#allocation2 + $0xa0] sm:$0xff] %v1046
        %1111 = vst [vmem:[#allocation2 + $0xa8] sm:$0xff] %v1047
        %1112 = vst [vmem:[#allocation2 + $0xb0] sm:$0xff] %v1048
        %1113 = vst [vmem:[#allocation2 + $0xb8] sm:$0xff] %v1049
        %1114 = vst [vmem:[#allocation2 + $0xc0] sm:$0xff] %v1050
        %1115 = vst [vmem:[#allocation2 + $0xc8] sm:$0xff] %v1051
        %1116 = vst [vmem:[#allocation2 + $0xd0] sm:$0xff] %v1052
        %1117 = vst [vmem:[#allocation2 + $0xd8] sm:$0xff] %v1053
        %1118 = vst [vmem:[#allocation2 + $0xe0] sm:$0xff] %v1054
        %1119 = vst [vmem:[#allocation2 + $0xe8] sm:$0xff] %v1055
        %1120 = vst [vmem:[#allocation2 + $0xf0] sm:$0xff] %v1056
        %1121 = vst [vmem:[#allocation2 + $0xf8] sm:$0xff] %v1057
        %1122 = vst [vmem:[#allocation2 + $0x100] sm:$0xff] %v1058
        %1123 = vst [vmem:[#allocation2 + $0x108] sm:$0xff] %v1059
        %1124 = vst [vmem:[#allocation2 + $0x110] sm:$0xff] %v1060
        %1125 = vst [vmem:[#allocation2 + $0x118] sm:$0xff] %v1061
        %1126 = vst [vmem:[#allocation2 + $0x120] sm:$0xff] %v1062
        %1127 = vst [vmem:[#allocation2 + $0x128] sm:$0xff] %v1063
        %1128 = vst [vmem:[#allocation2 + $0x130] sm:$0xff] %v1064
        %1129 = vst [vmem:[#allocation2 + $0x138] sm:$0xff] %v1065
        %1130 = vst [vmem:[#allocation2 + $0x140] sm:$0xff] %v1066
        %1131 = vst [vmem:[#allocation2 + $0x148] sm:$0xff] %v1067
        %1132 = vst [vmem:[#allocation2 + $0x150] sm:$0xff] %v1068
        %1133 = vst [vmem:[#allocation2 + $0x158] sm:$0xff] %v1069
        %1134 = vst [vmem:[#allocation2 + $0x160] sm:$0xff] %v1070
        %1135 = vst [vmem:[#allocation2 + $0x168] sm:$0xff] %v1071
        %1136 = vst [vmem:[#allocation2 + $0x170] sm:$0xff] %v1072
        %1137 = vst [vmem:[#allocation2 + $0x178] sm:$0xff] %v1073
        %1138 = vst [vmem:[#allocation2 + $0x180] sm:$0xff] %v1074
        %1139 = vst [vmem:[#allocation2 + $0x188] sm:$0xff] %v1075
        %1140 = vst [vmem:[#allocation2 + $0x190] sm:$0xff] %v1076
        %1141 = vst [vmem:[#allocation2 + $0x198] sm:$0xff] %v1077
        %1142 = vst [vmem:[#allocation2 + $0x1a0] sm:$0xff] %v1078
        %1143 = vst [vmem:[#allocation2 + $0x1a8] sm:$0xff] %v1079
        %1144 = vst [vmem:[#allocation2 + $0x1b0] sm:$0xff] %v1080
        %1145 = vst [vmem:[#allocation2 + $0x1b8] sm:$0xff] %v1081
        %1146 = vst [vmem:[#allocation2 + $0x1c0] sm:$0xff] %v1082
        %1147 = vst [vmem:[#allocation2 + $0x1c8] sm:$0xff] %v1083
        %1148 = vst [vmem:[#allocation2 + $0x1d0] sm:$0xff] %v1084
        %1149 = vst [vmem:[#allocation2 + $0x1d8] sm:$0xff] %v1085
        %1150 = vst [vmem:[#allocation2 + $0x1e0] sm:$0xff] %v1086
        %1151 = vst [vmem:[#allocation2 + $0x1e8] sm:$0xff] %v1087
        %1152 = vst [vmem:[#allocation2 + $0x1f0] sm:$0xff] %v1088
        %1153 = vst [vmem:[#allocation2 + $0x1f8] sm:$0xff] %v1089
        // Predicated region
        $region49: #{_conv_call.1} parent=31 // pred_check
          %p1154 = pneg %p262
        $region50: #{_conv_call.1} parent=31 // pred_check_branch
          %1156 = sbr.rel (%p1154) target = $region52
        $region51: #{_conv_call.1} parent=31 // pred_region
          %v1157 = vld [vmem:[#allocation2] sm:$0xff]
          %v1158 = vld [vmem:[#allocation2 + $0x8] sm:$0xff]
          %v1159 = vld [vmem:[#allocation2 + $0x10] sm:$0xff]
          %v1160 = vld [vmem:[#allocation2 + $0x18] sm:$0xff]
          %v1161 = vld [vmem:[#allocation2 + $0x20] sm:$0xff]
          %v1162 = vld [vmem:[#allocation2 + $0x28] sm:$0xff]
          %v1163 = vld [vmem:[#allocation2 + $0x30] sm:$0xff]
          %v1164 = vld [vmem:[#allocation2 + $0x38] sm:$0xff]
          %v1165 = vld [vmem:[#allocation2 + $0x40] sm:$0xff]
          %v1166 = vld [vmem:[#allocation2 + $0x48] sm:$0xff]
          %v1167 = vld [vmem:[#allocation2 + $0x50] sm:$0xff]
          %v1168 = vld [vmem:[#allocation2 + $0x58] sm:$0xff]
          %v1169 = vld [vmem:[#allocation2 + $0x60] sm:$0xff]
          %v1170 = vld [vmem:[#allocation2 + $0x68] sm:$0xff]
          %v1171 = vld [vmem:[#allocation2 + $0x70] sm:$0xff]
          %v1172 = vld [vmem:[#allocation2 + $0x78] sm:$0xff]
          %v1173 = vld [vmem:[#allocation2 + $0x80] sm:$0xff]
          %v1174 = vld [vmem:[#allocation2 + $0x88] sm:$0xff]
          %v1175 = vld [vmem:[#allocation2 + $0x90] sm:$0xff]
          %v1176 = vld [vmem:[#allocation2 + $0x98] sm:$0xff]
          %v1177 = vld [vmem:[#allocation2 + $0xa0] sm:$0xff]
          %v1178 = vld [vmem:[#allocation2 + $0xa8] sm:$0xff]
          %v1179 = vld [vmem:[#allocation2 + $0xb0] sm:$0xff]
          %v1180 = vld [vmem:[#allocation2 + $0xb8] sm:$0xff]
          %v1181 = vld [vmem:[#allocation2 + $0xc0] sm:$0xff]
          %v1182 = vld [vmem:[#allocation2 + $0xc8] sm:$0xff]
          %v1183 = vld [vmem:[#allocation2 + $0xd0] sm:$0xff]
          %v1184 = vld [vmem:[#allocation2 + $0xd8] sm:$0xff]
          %v1185 = vld [vmem:[#allocation2 + $0xe0] sm:$0xff]
          %v1186 = vld [vmem:[#allocation2 + $0xe8] sm:$0xff]
          %v1187 = vld [vmem:[#allocation2 + $0xf0] sm:$0xff]
          %v1188 = vld [vmem:[#allocation2 + $0xf8] sm:$0xff]
          %v1189 = vld [vmem:[#allocation2 + $0x100] sm:$0xff]
          %v1190 = vld [vmem:[#allocation2 + $0x108] sm:$0xff]
          %v1191 = vld [vmem:[#allocation2 + $0x110] sm:$0xff]
          %v1192 = vld [vmem:[#allocation2 + $0x118] sm:$0xff]
          %v1193 = vld [vmem:[#allocation2 + $0x120] sm:$0xff]
          %v1194 = vld [vmem:[#allocation2 + $0x128] sm:$0xff]
          %v1195 = vld [vmem:[#allocation2 + $0x130] sm:$0xff]
          %v1196 = vld [vmem:[#allocation2 + $0x138] sm:$0xff]
          %v1197 = vld [vmem:[#allocation2 + $0x140] sm:$0xff]
          %v1198 = vld [vmem:[#allocation2 + $0x148] sm:$0xff]
          %v1199 = vld [vmem:[#allocation2 + $0x150] sm:$0xff]
          %v1200 = vld [vmem:[#allocation2 + $0x158] sm:$0xff]
          %v1201 = vld [vmem:[#allocation2 + $0x160] sm:$0xff]
          %v1202 = vld [vmem:[#allocation2 + $0x168] sm:$0xff]
          %v1203 = vld [vmem:[#allocation2 + $0x170] sm:$0xff]
          %v1204 = vld [vmem:[#allocation2 + $0x178] sm:$0xff]
          %v1205 = vld [vmem:[#allocation2 + $0x180] sm:$0xff]
          %v1206 = vld [vmem:[#allocation2 + $0x188] sm:$0xff]
          %v1207 = vld [vmem:[#allocation2 + $0x190] sm:$0xff]
          %v1208 = vld [vmem:[#allocation2 + $0x198] sm:$0xff]
          %v1209 = vld [vmem:[#allocation2 + $0x1a0] sm:$0xff]
          %v1210 = vld [vmem:[#allocation2 + $0x1a8] sm:$0xff]
          %v1211 = vld [vmem:[#allocation2 + $0x1b0] sm:$0xff]
          %v1212 = vld [vmem:[#allocation2 + $0x1b8] sm:$0xff]
          %v1213 = vld [vmem:[#allocation2 + $0x1c0] sm:$0xff]
          %v1214 = vld [vmem:[#allocation2 + $0x1c8] sm:$0xff]
          %v1215 = vld [vmem:[#allocation2 + $0x1d0] sm:$0xff]
          %v1216 = vld [vmem:[#allocation2 + $0x1d8] sm:$0xff]
          %v1217 = vld [vmem:[#allocation2 + $0x1e0] sm:$0xff]
          %v1218 = vld [vmem:[#allocation2 + $0x1e8] sm:$0xff]
          %v1219 = vld [vmem:[#allocation2 + $0x1f0] sm:$0xff]
          %v1220 = vld [vmem:[#allocation2 + $0x1f8] sm:$0xff]
          %v1221 = vld [vmem:[#allocation8] sm:$0x1]
          %v1223 = vlaneseq
          %v1224 = vshrl.u32 %v1223, 7
          %v1225 = vsub.s32 0, %v1224
          %v1226 = vrot.slane %v1221, %v1225
          %v1228 = vadd.f32 %v1157, %v1226
          %v1229 = vadd.f32 %v1158, %v1226
          %v1230 = vadd.f32 %v1159, %v1226
          %v1231 = vadd.f32 %v1160, %v1226
          %v1232 = vadd.f32 %v1161, %v1226
          %v1233 = vadd.f32 %v1162, %v1226
          %v1234 = vadd.f32 %v1163, %v1226
          %v1235 = vadd.f32 %v1164, %v1226
          %v1236 = vadd.f32 %v1165, %v1226
          %v1237 = vadd.f32 %v1166, %v1226
          %v1238 = vadd.f32 %v1167, %v1226
          %v1239 = vadd.f32 %v1168, %v1226
          %v1240 = vadd.f32 %v1169, %v1226
          %v1241 = vadd.f32 %v1170, %v1226
          %v1242 = vadd.f32 %v1171, %v1226
          %v1243 = vadd.f32 %v1172, %v1226
          %v1244 = vadd.f32 %v1173, %v1226
          %v1245 = vadd.f32 %v1174, %v1226
          %v1246 = vadd.f32 %v1175, %v1226
          %v1247 = vadd.f32 %v1176, %v1226
          %v1248 = vadd.f32 %v1177, %v1226
          %v1249 = vadd.f32 %v1178, %v1226
          %v1250 = vadd.f32 %v1179, %v1226
          %v1251 = vadd.f32 %v1180, %v1226
          %v1252 = vadd.f32 %v1181, %v1226
          %v1253 = vadd.f32 %v1182, %v1226
          %v1254 = vadd.f32 %v1183, %v1226
          %v1255 = vadd.f32 %v1184, %v1226
          %v1256 = vadd.f32 %v1185, %v1226
          %v1257 = vadd.f32 %v1186, %v1226
          %v1258 = vadd.f32 %v1187, %v1226
          %v1259 = vadd.f32 %v1188, %v1226
          %v1260 = vadd.f32 %v1189, %v1226
          %v1261 = vadd.f32 %v1190, %v1226
          %v1262 = vadd.f32 %v1191, %v1226
          %v1263 = vadd.f32 %v1192, %v1226
          %v1264 = vadd.f32 %v1193, %v1226
          %v1265 = vadd.f32 %v1194, %v1226
          %v1266 = vadd.f32 %v1195, %v1226
          %v1267 = vadd.f32 %v1196, %v1226
          %v1268 = vadd.f32 %v1197, %v1226
          %v1269 = vadd.f32 %v1198, %v1226
          %v1270 = vadd.f32 %v1199, %v1226
          %v1271 = vadd.f32 %v1200, %v1226
          %v1272 = vadd.f32 %v1201, %v1226
          %v1273 = vadd.f32 %v1202, %v1226
          %v1274 = vadd.f32 %v1203, %v1226
          %v1275 = vadd.f32 %v1204, %v1226
          %v1276 = vadd.f32 %v1205, %v1226
          %v1277 = vadd.f32 %v1206, %v1226
          %v1278 = vadd.f32 %v1207, %v1226
          %v1279 = vadd.f32 %v1208, %v1226
          %v1280 = vadd.f32 %v1209, %v1226
          %v1281 = vadd.f32 %v1210, %v1226
          %v1282 = vadd.f32 %v1211, %v1226
          %v1283 = vadd.f32 %v1212, %v1226
          %v1284 = vadd.f32 %v1213, %v1226
          %v1285 = vadd.f32 %v1214, %v1226
          %v1286 = vadd.f32 %v1215, %v1226
          %v1287 = vadd.f32 %v1216, %v1226
          %v1288 = vadd.f32 %v1217, %v1226
          %v1289 = vadd.f32 %v1218, %v1226
          %v1290 = vadd.f32 %v1219, %v1226
          %v1291 = vadd.f32 %v1220, %v1226
          %v1292 = vmul.f32 %v1228, 0.1
          %v1293 = vmul.f32 %v1229, 0.1
          %v1294 = vmul.f32 %v1230, 0.1
          %v1295 = vmul.f32 %v1231, 0.1
          %v1296 = vmul.f32 %v1232, 0.1
          %v1297 = vmul.f32 %v1233, 0.1
          %v1298 = vmul.f32 %v1234, 0.1
          %v1299 = vmul.f32 %v1235, 0.1
          %v1300 = vmul.f32 %v1236, 0.1
          %v1301 = vmul.f32 %v1237, 0.1
          %v1302 = vmul.f32 %v1238, 0.1
          %v1303 = vmul.f32 %v1239, 0.1
          %v1304 = vmul.f32 %v1240, 0.1
          %v1305 = vmul.f32 %v1241, 0.1
          %v1306 = vmul.f32 %v1242, 0.1
          %v1307 = vmul.f32 %v1243, 0.1
          %v1308 = vmul.f32 %v1244, 0.1
          %v1309 = vmul.f32 %v1245, 0.1
          %v1310 = vmul.f32 %v1246, 0.1
          %v1311 = vmul.f32 %v1247, 0.1
          %v1312 = vmul.f32 %v1248, 0.1
          %v1313 = vmul.f32 %v1249, 0.1
          %v1314 = vmul.f32 %v1250, 0.1
          %v1315 = vmul.f32 %v1251, 0.1
          %v1316 = vmul.f32 %v1252, 0.1
          %v1317 = vmul.f32 %v1253, 0.1
          %v1318 = vmul.f32 %v1254, 0.1
          %v1319 = vmul.f32 %v1255, 0.1
          %v1320 = vmul.f32 %v1256, 0.1
          %v1321 = vmul.f32 %v1257, 0.1
          %v1322 = vmul.f32 %v1258, 0.1
          %v1323 = vmul.f32 %v1259, 0.1
          %v1324 = vmul.f32 %v1260, 0.1
          %v1325 = vmul.f32 %v1261, 0.1
          %v1326 = vmul.f32 %v1262, 0.1
          %v1327 = vmul.f32 %v1263, 0.1
          %v1328 = vmul.f32 %v1264, 0.1
          %v1329 = vmul.f32 %v1265, 0.1
          %v1330 = vmul.f32 %v1266, 0.1
          %v1331 = vmul.f32 %v1267, 0.1
          %v1332 = vmul.f32 %v1268, 0.1
          %v1333 = vmul.f32 %v1269, 0.1
          %v1334 = vmul.f32 %v1270, 0.1
          %v1335 = vmul.f32 %v1271, 0.1
          %v1336 = vmul.f32 %v1272, 0.1
          %v1337 = vmul.f32 %v1273, 0.1
          %v1338 = vmul.f32 %v1274, 0.1
          %v1339 = vmul.f32 %v1275, 0.1
          %v1340 = vmul.f32 %v1276, 0.1
          %v1341 = vmul.f32 %v1277, 0.1
          %v1342 = vmul.f32 %v1278, 0.1
          %v1343 = vmul.f32 %v1279, 0.1
          %v1344 = vmul.f32 %v1280, 0.1
          %v1345 = vmul.f32 %v1281, 0.1
          %v1346 = vmul.f32 %v1282, 0.1
          %v1347 = vmul.f32 %v1283, 0.1
          %v1348 = vmul.f32 %v1284, 0.1
          %v1349 = vmul.f32 %v1285, 0.1
          %v1350 = vmul.f32 %v1286, 0.1
          %v1351 = vmul.f32 %v1287, 0.1
          %v1352 = vmul.f32 %v1288, 0.1
          %v1353 = vmul.f32 %v1289, 0.1
          %v1354 = vmul.f32 %v1290, 0.1
          %v1355 = vmul.f32 %v1291, 0.1
          %v1356 = vmax.f32 %v1228, %v1292
          %v1357 = vmax.f32 %v1229, %v1293
          %v1358 = vmax.f32 %v1230, %v1294
          %v1359 = vmax.f32 %v1231, %v1295
          %v1360 = vmax.f32 %v1232, %v1296
          %v1361 = vmax.f32 %v1233, %v1297
          %v1362 = vmax.f32 %v1234, %v1298
          %v1363 = vmax.f32 %v1235, %v1299
          %v1364 = vmax.f32 %v1236, %v1300
          %v1365 = vmax.f32 %v1237, %v1301
          %v1366 = vmax.f32 %v1238, %v1302
          %v1367 = vmax.f32 %v1239, %v1303
          %v1368 = vmax.f32 %v1240, %v1304
          %v1369 = vmax.f32 %v1241, %v1305
          %v1370 = vmax.f32 %v1242, %v1306
          %v1371 = vmax.f32 %v1243, %v1307
          %v1372 = vmax.f32 %v1244, %v1308
          %v1373 = vmax.f32 %v1245, %v1309
          %v1374 = vmax.f32 %v1246, %v1310
          %v1375 = vmax.f32 %v1247, %v1311
          %v1376 = vmax.f32 %v1248, %v1312
          %v1377 = vmax.f32 %v1249, %v1313
          %v1378 = vmax.f32 %v1250, %v1314
          %v1379 = vmax.f32 %v1251, %v1315
          %v1380 = vmax.f32 %v1252, %v1316
          %v1381 = vmax.f32 %v1253, %v1317
          %v1382 = vmax.f32 %v1254, %v1318
          %v1383 = vmax.f32 %v1255, %v1319
          %v1384 = vmax.f32 %v1256, %v1320
          %v1385 = vmax.f32 %v1257, %v1321
          %v1386 = vmax.f32 %v1258, %v1322
          %v1387 = vmax.f32 %v1259, %v1323
          %v1388 = vmax.f32 %v1260, %v1324
          %v1389 = vmax.f32 %v1261, %v1325
          %v1390 = vmax.f32 %v1262, %v1326
          %v1391 = vmax.f32 %v1263, %v1327
          %v1392 = vmax.f32 %v1264, %v1328
          %v1393 = vmax.f32 %v1265, %v1329
          %v1394 = vmax.f32 %v1266, %v1330
          %v1395 = vmax.f32 %v1267, %v1331
          %v1396 = vmax.f32 %v1268, %v1332
          %v1397 = vmax.f32 %v1269, %v1333
          %v1398 = vmax.f32 %v1270, %v1334
          %v1399 = vmax.f32 %v1271, %v1335
          %v1400 = vmax.f32 %v1272, %v1336
          %v1401 = vmax.f32 %v1273, %v1337
          %v1402 = vmax.f32 %v1274, %v1338
          %v1403 = vmax.f32 %v1275, %v1339
          %v1404 = vmax.f32 %v1276, %v1340
          %v1405 = vmax.f32 %v1277, %v1341
          %v1406 = vmax.f32 %v1278, %v1342
          %v1407 = vmax.f32 %v1279, %v1343
          %v1408 = vmax.f32 %v1280, %v1344
          %v1409 = vmax.f32 %v1281, %v1345
          %v1410 = vmax.f32 %v1282, %v1346
          %v1411 = vmax.f32 %v1283, %v1347
          %v1412 = vmax.f32 %v1284, %v1348
          %v1413 = vmax.f32 %v1285, %v1349
          %v1414 = vmax.f32 %v1286, %v1350
          %v1415 = vmax.f32 %v1287, %v1351
          %v1416 = vmax.f32 %v1288, %v1352
          %v1417 = vmax.f32 %v1289, %v1353
          %v1418 = vmax.f32 %v1290, %v1354
          %v1419 = vmax.f32 %v1291, %v1355
          %v1420 = vpack.c.bf16 %v1357, %v1356
          %v1421 = vpack.c.bf16 %v1359, %v1358
          %v1422 = vpack.c.bf16 %v1361, %v1360
          %v1423 = vpack.c.bf16 %v1363, %v1362
          %v1424 = vpack.c.bf16 %v1365, %v1364
          %v1425 = vpack.c.bf16 %v1367, %v1366
          %v1426 = vpack.c.bf16 %v1369, %v1368
          %v1427 = vpack.c.bf16 %v1371, %v1370
          %v1428 = vpack.c.bf16 %v1373, %v1372
          %v1429 = vpack.c.bf16 %v1375, %v1374
          %v1430 = vpack.c.bf16 %v1377, %v1376
          %v1431 = vpack.c.bf16 %v1379, %v1378
          %v1432 = vpack.c.bf16 %v1381, %v1380
          %v1433 = vpack.c.bf16 %v1383, %v1382
          %v1434 = vpack.c.bf16 %v1385, %v1384
          %v1435 = vpack.c.bf16 %v1387, %v1386
          %v1436 = vpack.c.bf16 %v1389, %v1388
          %v1437 = vpack.c.bf16 %v1391, %v1390
          %v1438 = vpack.c.bf16 %v1393, %v1392
          %v1439 = vpack.c.bf16 %v1395, %v1394
          %v1440 = vpack.c.bf16 %v1397, %v1396
          %v1441 = vpack.c.bf16 %v1399, %v1398
          %v1442 = vpack.c.bf16 %v1401, %v1400
          %v1443 = vpack.c.bf16 %v1403, %v1402
          %v1444 = vpack.c.bf16 %v1405, %v1404
          %v1445 = vpack.c.bf16 %v1407, %v1406
          %v1446 = vpack.c.bf16 %v1409, %v1408
          %v1447 = vpack.c.bf16 %v1411, %v1410
          %v1448 = vpack.c.bf16 %v1413, %v1412
          %v1449 = vpack.c.bf16 %v1415, %v1414
          %v1450 = vpack.c.bf16 %v1417, %v1416
          %v1451 = vpack.c.bf16 %v1419, %v1418
          %v1484 = vunpack.c.l.b16 %v1420
          %v1485 = vunpack.c.h.b16 %v1420
          %v1486 = vunpack.c.l.b16 %v1421
          %v1487 = vunpack.c.h.b16 %v1421
          %v1488 = vunpack.c.l.b16 %v1422
          %v1489 = vunpack.c.h.b16 %v1422
          %v1490 = vunpack.c.l.b16 %v1423
          %v1491 = vunpack.c.h.b16 %v1423
          %v1492 = vunpack.c.l.b16 %v1424
          %v1493 = vunpack.c.h.b16 %v1424
          %v1494 = vunpack.c.l.b16 %v1425
          %v1495 = vunpack.c.h.b16 %v1425
          %v1496 = vunpack.c.l.b16 %v1426
          %v1497 = vunpack.c.h.b16 %v1426
          %v1498 = vunpack.c.l.b16 %v1427
          %v1499 = vunpack.c.h.b16 %v1427
          %v1500 = vunpack.c.l.b16 %v1428
          %v1501 = vunpack.c.h.b16 %v1428
          %v1502 = vunpack.c.l.b16 %v1429
          %v1503 = vunpack.c.h.b16 %v1429
          %v1504 = vunpack.c.l.b16 %v1430
          %v1505 = vunpack.c.h.b16 %v1430
          %v1506 = vunpack.c.l.b16 %v1431
          %v1507 = vunpack.c.h.b16 %v1431
          %v1508 = vunpack.c.l.b16 %v1432
          %v1509 = vunpack.c.h.b16 %v1432
          %v1510 = vunpack.c.l.b16 %v1433
          %v1511 = vunpack.c.h.b16 %v1433
          %v1512 = vunpack.c.l.b16 %v1434
          %v1513 = vunpack.c.h.b16 %v1434
          %v1514 = vunpack.c.l.b16 %v1435
          %v1515 = vunpack.c.h.b16 %v1435
          %v1516 = vunpack.c.l.b16 %v1436
          %v1517 = vunpack.c.h.b16 %v1436
          %v1518 = vunpack.c.l.b16 %v1437
          %v1519 = vunpack.c.h.b16 %v1437
          %v1520 = vunpack.c.l.b16 %v1438
          %v1521 = vunpack.c.h.b16 %v1438
          %v1522 = vunpack.c.l.b16 %v1439
          %v1523 = vunpack.c.h.b16 %v1439
          %v1524 = vunpack.c.l.b16 %v1440
          %v1525 = vunpack.c.h.b16 %v1440
          %v1526 = vunpack.c.l.b16 %v1441
          %v1527 = vunpack.c.h.b16 %v1441
          %v1528 = vunpack.c.l.b16 %v1442
          %v1529 = vunpack.c.h.b16 %v1442
          %v1530 = vunpack.c.l.b16 %v1443
          %v1531 = vunpack.c.h.b16 %v1443
          %v1532 = vunpack.c.l.b16 %v1444
          %v1533 = vunpack.c.h.b16 %v1444
          %v1534 = vunpack.c.l.b16 %v1445
          %v1535 = vunpack.c.h.b16 %v1445
          %v1536 = vunpack.c.l.b16 %v1446
          %v1537 = vunpack.c.h.b16 %v1446
          %v1538 = vunpack.c.l.b16 %v1447
          %v1539 = vunpack.c.h.b16 %v1447
          %v1540 = vunpack.c.l.b16 %v1448
          %v1541 = vunpack.c.h.b16 %v1448
          %v1542 = vunpack.c.l.b16 %v1449
          %v1543 = vunpack.c.h.b16 %v1449
          %v1544 = vunpack.c.l.b16 %v1450
          %v1545 = vunpack.c.h.b16 %v1450
          %v1546 = vunpack.c.l.b16 %v1451
          %v1547 = vunpack.c.h.b16 %v1451
          %v1548 = vpack.c.b16 %v1484, %v1484
          %v1549 = vpack.c.b16 %v1485, %v1485
          %v1550 = vpack.c.b16 %v1486, %v1486
          %v1551 = vpack.c.b16 %v1487, %v1487
          %v1552 = vpack.c.b16 %v1488, %v1488
          %v1553 = vpack.c.b16 %v1489, %v1489
          %v1554 = vpack.c.b16 %v1490, %v1490
          %v1555 = vpack.c.b16 %v1491, %v1491
          %v1556 = vpack.c.b16 %v1492, %v1492
          %v1557 = vpack.c.b16 %v1493, %v1493
          %v1558 = vpack.c.b16 %v1494, %v1494
          %v1559 = vpack.c.b16 %v1495, %v1495
          %v1560 = vpack.c.b16 %v1496, %v1496
          %v1561 = vpack.c.b16 %v1497, %v1497
          %v1562 = vpack.c.b16 %v1498, %v1498
          %v1563 = vpack.c.b16 %v1499, %v1499
          %v1564 = vpack.c.b16 %v1500, %v1500
          %v1565 = vpack.c.b16 %v1501, %v1501
          %v1566 = vpack.c.b16 %v1502, %v1502
          %v1567 = vpack.c.b16 %v1503, %v1503
          %v1568 = vpack.c.b16 %v1504, %v1504
          %v1569 = vpack.c.b16 %v1505, %v1505
          %v1570 = vpack.c.b16 %v1506, %v1506
          %v1571 = vpack.c.b16 %v1507, %v1507
          %v1572 = vpack.c.b16 %v1508, %v1508
          %v1573 = vpack.c.b16 %v1509, %v1509
          %v1574 = vpack.c.b16 %v1510, %v1510
          %v1575 = vpack.c.b16 %v1511, %v1511
          %v1576 = vpack.c.b16 %v1512, %v1512
          %v1577 = vpack.c.b16 %v1513, %v1513
          %v1578 = vpack.c.b16 %v1514, %v1514
          %v1579 = vpack.c.b16 %v1515, %v1515
          %v1580 = vpack.c.b16 %v1516, %v1516
          %v1581 = vpack.c.b16 %v1517, %v1517
          %v1582 = vpack.c.b16 %v1518, %v1518
          %v1583 = vpack.c.b16 %v1519, %v1519
          %v1584 = vpack.c.b16 %v1520, %v1520
          %v1585 = vpack.c.b16 %v1521, %v1521
          %v1586 = vpack.c.b16 %v1522, %v1522
          %v1587 = vpack.c.b16 %v1523, %v1523
          %v1588 = vpack.c.b16 %v1524, %v1524
          %v1589 = vpack.c.b16 %v1525, %v1525
          %v1590 = vpack.c.b16 %v1526, %v1526
          %v1591 = vpack.c.b16 %v1527, %v1527
          %v1592 = vpack.c.b16 %v1528, %v1528
          %v1593 = vpack.c.b16 %v1529, %v1529
          %v1594 = vpack.c.b16 %v1530, %v1530
          %v1595 = vpack.c.b16 %v1531, %v1531
          %v1596 = vpack.c.b16 %v1532, %v1532
          %v1597 = vpack.c.b16 %v1533, %v1533
          %v1598 = vpack.c.b16 %v1534, %v1534
          %v1599 = vpack.c.b16 %v1535, %v1535
          %v1600 = vpack.c.b16 %v1536, %v1536
          %v1601 = vpack.c.b16 %v1537, %v1537
          %v1602 = vpack.c.b16 %v1538, %v1538
          %v1603 = vpack.c.b16 %v1539, %v1539
          %v1604 = vpack.c.b16 %v1540, %v1540
          %v1605 = vpack.c.b16 %v1541, %v1541
          %v1606 = vpack.c.b16 %v1542, %v1542
          %v1607 = vpack.c.b16 %v1543, %v1543
          %v1608 = vpack.c.b16 %v1544, %v1544
          %v1609 = vpack.c.b16 %v1545, %v1545
          %v1610 = vpack.c.b16 %v1546, %v1546
          %v1611 = vpack.c.b16 %v1547, %v1547
          %1676 = vst [vmem:[%s257] sm:$0xf] %v1548
          %1677 = vst [vmem:[%s257 + $0x4] sm:$0xf] %v1549
          %1678 = vst [vmem:[%s257 + $0x8] sm:$0xf] %v1550
          %1679 = vst [vmem:[%s257 + $0xc] sm:$0xf] %v1551
          %1680 = vst [vmem:[%s257 + $0x10] sm:$0xf] %v1552
          %1681 = vst [vmem:[%s257 + $0x14] sm:$0xf] %v1553
          %1682 = vst [vmem:[%s257 + $0x18] sm:$0xf] %v1554
          %1683 = vst [vmem:[%s257 + $0x1c] sm:$0xf] %v1555
          %1684 = vst [vmem:[%s257 + $0x20] sm:$0xf] %v1556
          %1685 = vst [vmem:[%s257 + $0x24] sm:$0xf] %v1557
          %1686 = vst [vmem:[%s257 + $0x28] sm:$0xf] %v1558
          %1687 = vst [vmem:[%s257 + $0x2c] sm:$0xf] %v1559
          %1688 = vst [vmem:[%s257 + $0x30] sm:$0xf] %v1560
          %1689 = vst [vmem:[%s257 + $0x34] sm:$0xf] %v1561
          %1690 = vst [vmem:[%s257 + $0x38] sm:$0xf] %v1562
          %1691 = vst [vmem:[%s257 + $0x3c] sm:$0xf] %v1563
          %1692 = vst [vmem:[%s257 + $0x40] sm:$0xf] %v1564
          %1693 = vst [vmem:[%s257 + $0x44] sm:$0xf] %v1565
          %1694 = vst [vmem:[%s257 + $0x48] sm:$0xf] %v1566
          %1695 = vst [vmem:[%s257 + $0x4c] sm:$0xf] %v1567
          %1696 = vst [vmem:[%s257 + $0x50] sm:$0xf] %v1568
          %1697 = vst [vmem:[%s257 + $0x54] sm:$0xf] %v1569
          %1698 = vst [vmem:[%s257 + $0x58] sm:$0xf] %v1570
          %1699 = vst [vmem:[%s257 + $0x5c] sm:$0xf] %v1571
          %1700 = vst [vmem:[%s257 + $0x60] sm:$0xf] %v1572
          %1701 = vst [vmem:[%s257 + $0x64] sm:$0xf] %v1573
          %1702 = vst [vmem:[%s257 + $0x68] sm:$0xf] %v1574
          %1703 = vst [vmem:[%s257 + $0x6c] sm:$0xf] %v1575
          %1704 = vst [vmem:[%s257 + $0x70] sm:$0xf] %v1576
          %1705 = vst [vmem:[%s257 + $0x74] sm:$0xf] %v1577
          %1706 = vst [vmem:[%s257 + $0x78] sm:$0xf] %v1578
          %1707 = vst [vmem:[%s257 + $0x7c] sm:$0xf] %v1579
          %1708 = vst [vmem:[%s257 + $0x80] sm:$0xf] %v1580
          %1709 = vst [vmem:[%s257 + $0x84] sm:$0xf] %v1581
          %1710 = vst [vmem:[%s257 + $0x88] sm:$0xf] %v1582
          %1711 = vst [vmem:[%s257 + $0x8c] sm:$0xf] %v1583
          %1712 = vst [vmem:[%s257 + $0x90] sm:$0xf] %v1584
          %1713 = vst [vmem:[%s257 + $0x94] sm:$0xf] %v1585
          %1714 = vst [vmem:[%s257 + $0x98] sm:$0xf] %v1586
          %1715 = vst [vmem:[%s257 + $0x9c] sm:$0xf] %v1587
          %1716 = vst [vmem:[%s257 + $0xa0] sm:$0xf] %v1588
          %1717 = vst [vmem:[%s257 + $0xa4] sm:$0xf] %v1589
          %1718 = vst [vmem:[%s257 + $0xa8] sm:$0xf] %v1590
          %1719 = vst [vmem:[%s257 + $0xac] sm:$0xf] %v1591
          %1720 = vst [vmem:[%s257 + $0xb0] sm:$0xf] %v1592
          %1721 = vst [vmem:[%s257 + $0xb4] sm:$0xf] %v1593
          %1722 = vst [vmem:[%s257 + $0xb8] sm:$0xf] %v1594
          %1723 = vst [vmem:[%s257 + $0xbc] sm:$0xf] %v1595
          %1724 = vst [vmem:[%s257 + $0xc0] sm:$0xf] %v1596
          %1725 = vst [vmem:[%s257 + $0xc4] sm:$0xf] %v1597
          %1726 = vst [vmem:[%s257 + $0xc8] sm:$0xf] %v1598
          %1727 = vst [vmem:[%s257 + $0xcc] sm:$0xf] %v1599
          %1728 = vst [vmem:[%s257 + $0xd0] sm:$0xf] %v1600
          %1729 = vst [vmem:[%s257 + $0xd4] sm:$0xf] %v1601
          %1730 = vst [vmem:[%s257 + $0xd8] sm:$0xf] %v1602
          %1731 = vst [vmem:[%s257 + $0xdc] sm:$0xf] %v1603
          %1732 = vst [vmem:[%s257 + $0xe0] sm:$0xf] %v1604
          %1733 = vst [vmem:[%s257 + $0xe4] sm:$0xf] %v1605
          %1734 = vst [vmem:[%s257 + $0xe8] sm:$0xf] %v1606
          %1735 = vst [vmem:[%s257 + $0xec] sm:$0xf] %v1607
          %1736 = vst [vmem:[%s257 + $0xf0] sm:$0xf] %v1608
          %1737 = vst [vmem:[%s257 + $0xf4] sm:$0xf] %v1609
          %1738 = vst [vmem:[%s257 + $0xf8] sm:$0xf] %v1610
          %1739 = vst [vmem:[%s257 + $0xfc] sm:$0xf] %v1611
        $region52: #{_conv_call.1} parent=31 // pred_fallthru
          _
        %s1740 = sand.u32 %s132, 1
        %s1741 = scalar_lea.sflag [#allocation5], %s1740
        %s1742 = sand.u32 %s132, 1
        %s1743 = smul.addr %s1742, 256
        %s1744 = scalar_lea.vmem [#allocation9], %s1743
        // Predicated region
        $region53: #{_conv_call.1} parent=31 // pred_check
          %p1745 = pneg %p142
        $region54: #{_conv_call.1} parent=31 // pred_check_branch
          %1747 = sbr.rel (%p1745) target = $region56
        $region55: #{_conv_call.1} parent=31 // pred_region
          %s1748 = smul.u32 64, %s26
          %s1750 = ssub.s32 4096, 4096
          %1751 = vsyncadd %s1741, %s1750
          %s1752 = sadd.s32 %s27, %s1748
          %s1753 = smul.addr %s1752, 64
          %s1754 = scalar_lea.hbm %s3, %s1753
          %s1755 = sshll.u32 %s1744, 4
          %s1756 = int_to_ptr.vmem [resolvable:$true] %s1755
          %1761 = dma.vmem_to_hbm [thread:$0]  %s1756, 4096, %s1754, %s1741, 64, 64, 4
        $region56: #{_conv_call.1} parent=31 // pred_fallthru
          _
      $region32: #{_conv_call.1} parent=5 // pred_fallthru
        _
      %p1762 = scmp.le.s32.totalorder 2, %s16
      // Predicated region
      $region57: #{_conv_call.1} parent=5 // pred_check
        %p1763 = pneg %p1762
      $region58: #{_conv_call.1} parent=5 // pred_check_branch
        %1765 = sbr.rel (%p1763) target = $region60
      $region59: #{_conv_call.1} parent=5 // pred_region
        %s1766 = ssub.s32 %s16, 2
        // Predicated region
        $region61: #{_conv_call.1} parent=59 // pred_check
          %p1767 = pneg %p148
        $region62: #{_conv_call.1} parent=59 // pred_check_branch
          %1769 = sbr.rel (%p1767) target = $region64
        $region63: #{_conv_call.1} parent=59 // pred_region
          %s1770 = sand.u32 %s133, 1
          %s1771 = scalar_lea.sflag [#allocation5], %s1770
          %s1772 = sand.u32 %s133, 1
          %s1773 = smul.addr %s1772, 256
          %s1774 = scalar_lea.vmem [#allocation9], %s1773
          %1775 = dma.done %s1771, 4096
        $region64: #{_conv_call.1} parent=59 // pred_fallthru
          _
      $region60: #{_conv_call.1} parent=5 // pred_fallthru
        _
    $region6: #{_conv_call.1} parent=1 // loop_footer
      %s20 = sadd.s32 1, %s16
    $region7: #{_conv_call.1} parent=1 // loop_footer_branch
      %15 = sbr.rel target = $region3
    $region8: #{_conv_call.1} parent=1 // loop_exit
      _
    %1776 = vsyncpa [#allocation4], 1
    %s1777 = scalar_lea.sflag [#allocation4], 1
    %1778 = vsyncpa %s1777, 1
    %1779 = vsyncpa [#allocation7], 1
    %1780 = vsyncpa [#allocation5], 1
    %s1781 = scalar_lea.sflag [#allocation5], 1
    %1782 = vsyncpa %s1781, 1

</llo_original>
